<compile_context>
chip_gen: v7x
topology: tpu7x:2x2x1
jax: 0.10.0
libtpu: 0.0.40
codegen_flags: <defaults>
</compile_context>

<pallas_src>
import functools

import jax
import jax.numpy as jnp
from jax import lax
from jax.experimental import pallas as pl
from jax.experimental.pallas import tpu as pltpu

RMS_EPS = 1e-6
ROPE_THETA = 10000.0
_NEG_INF = -1e30
_VMEM_LIMIT = 48 * 1024 * 1024   # <= v7x 64 MiB physical; v5e/v6e have headroom

_TM = 128     # M (token) tile for GEMMs -- keeps >=2 parallel blocks at T>=256
_TN = 512     # N tile for the q projection
_TK = 512     # K tile for the o projection
_TI = 512     # intermediate tile for the MLP
_TQ = 128     # q tile in attention
_TKV = 256    # kv tile in attention (fills a 256-wide MXU pass)


def _pick_tile(dim, pref, align):
    """Largest multiple of `align` that divides `dim` and is <= `pref` (else `dim`)."""
    if dim <= pref or dim % align != 0:
        return dim
    t = min(pref, dim)
    t -= t % align
    while t >= align:
        if dim % t == 0:
            return t
        t -= align
    return dim


# ------------------------------ kernels --------------------------------------

def _norm_qproj_kernel(x_ref, g_ref, w_ref, q_ref, xn_ref):
    # q = RMSNorm(x) @ w_q, norm fused in (normed activation never hits HBM).
    j = pl.program_id(1)

    @pl.when(j == 0)
    def _():
        z = x_ref[...].astype(jnp.float32)
        var = jnp.mean(z * z, axis=-1, keepdims=True)
        xn_ref[...] = (z * lax.rsqrt(var + RMS_EPS)
                       * g_ref[...].astype(jnp.float32)).astype(xn_ref.dtype)

    q_ref[...] = jnp.dot(xn_ref[...], w_ref[...],
                         preferred_element_type=jnp.float32).astype(q_ref.dtype)


def _add_norm_qproj_kernel(x_ref, r_ref, g_ref, w_ref, q_ref, res_ref, xn_ref):
    # residual' = x + residual ; q = RMSNorm(residual') @ w_q  (fused).
    j = pl.program_id(1)

    @pl.when(j == 0)
    def _():
        z = x_ref[...].astype(jnp.float32) + r_ref[...].astype(jnp.float32)
        res_ref[...] = z.astype(res_ref.dtype)
        var = jnp.mean(z * z, axis=-1, keepdims=True)
        xn_ref[...] = (z * lax.rsqrt(var + RMS_EPS)
                       * g_ref[...].astype(jnp.float32)).astype(xn_ref.dtype)

    q_ref[...] = jnp.dot(xn_ref[...], w_ref[...],
                         preferred_element_type=jnp.float32).astype(q_ref.dtype)


def _oproj_add_norm_kernel(x_ref, w_ref, r_ref, g_ref, n_ref, res_ref, acc_ref):
    # out = x @ w_o ; residual' = out + residual ; normed = RMSNorm(residual').
    k = pl.program_id(1)

    @pl.when(k == 0)
    def _():
        acc_ref[...] = jnp.zeros(acc_ref.shape, acc_ref.dtype)

    acc_ref[...] += jnp.dot(x_ref[...], w_ref[...],
                            preferred_element_type=jnp.float32)

    @pl.when(k == pl.num_programs(1) - 1)
    def _():
        z = acc_ref[...] + r_ref[...].astype(jnp.float32)
        res_ref[...] = z.astype(res_ref.dtype)
        var = jnp.mean(z * z, axis=-1, keepdims=True)
        n_ref[...] = (z * lax.rsqrt(var + RMS_EPS)
                      * g_ref[...].astype(jnp.float32)).astype(n_ref.dtype)


def _mlp_kernel(x_ref, wgu_ref, wd_ref, o_ref, acc_ref, *, ti):
    # down_proj(silu(gate(x)) * up(x)); gate/up packed per intermediate tile.
    j = pl.program_id(1)

    @pl.when(j == 0)
    def _():
        acc_ref[...] = jnp.zeros(acc_ref.shape, acc_ref.dtype)

    gu = jnp.dot(x_ref[...], wgu_ref[...], preferred_element_type=jnp.float32)
    g = gu[:, :ti]
    u = gu[:, ti:]
    h = (g * lax.logistic(g)) * u
    acc_ref[...] += jnp.dot(h.astype(jnp.bfloat16), wd_ref[...],
                            preferred_element_type=jnp.float32)

    @pl.when(j == pl.num_programs(1) - 1)
    def _():
        o_ref[...] = acc_ref[...].astype(o_ref.dtype)


def _attn_kernel(q_ref, k_ref, v_ref, cos_ref, sin_ref, o_ref,
                 qrot_ref, m_ref, l_ref, acc_ref, *,
                 group, dh, tq, tkv, scale):
    # grid = (kv_head j, q tile qi, kv tile ki); ki innermost / "arbitrary".
    qi = pl.program_id(1)
    ki = pl.program_id(2)

    @pl.when(ki == 0)
    def _init():
        m_ref[...] = jnp.full(m_ref.shape, -jnp.inf, m_ref.dtype)
        l_ref[...] = jnp.zeros(l_ref.shape, l_ref.dtype)
        acc_ref[...] = jnp.zeros(acc_ref.shape, acc_ref.dtype)
        # Neox RoPE, applied once per q tile; the GQA group's heads are stacked
        # along rows so the QK^T / PV matmuls run with M = group*tq on the MXU.
        cos = cos_ref[...].astype(jnp.float32)
        sin = sin_ref[...].astype(jnp.float32)
        d2 = dh // 2
        for g in range(group):
            qg = q_ref[:, g * dh:(g + 1) * dh].astype(jnp.float32)
            rot = jnp.concatenate([-qg[:, d2:], qg[:, :d2]], axis=-1)
            qr = (qg * cos + rot * sin) * scale
            qrot_ref[g * tq:(g + 1) * tq, :] = qr.astype(qrot_ref.dtype)

    @pl.when(ki * tkv < (qi + 1) * tq)          # skip fully-masked future kv tiles
    def _compute():
        # K arrives pre-transposed (dh, tkv) -> plain MXU matmul (no XLU transpose).
        s = jnp.dot(qrot_ref[...], k_ref[...],
                    preferred_element_type=jnp.float32)       # (group*tq, tkv)

        def _mask(sv):
            row = qi * tq + lax.broadcasted_iota(jnp.int32, sv.shape, 0) % tq
            col = ki * tkv + lax.broadcasted_iota(jnp.int32, sv.shape, 1)
            return jnp.where(row >= col, sv, _NEG_INF)

        # Only diagonal-straddling tiles need the causal mask.
        s = lax.cond((ki + 1) * tkv - 1 > qi * tq, _mask, lambda sv: sv, s)

        m_prev = m_ref[...]
        m_new = jnp.maximum(m_prev, jnp.max(s, axis=-1, keepdims=True))
        alpha = jnp.exp(m_prev - m_new)
        p = jnp.exp(s - m_new)
        l_ref[...] = alpha * l_ref[...] + jnp.sum(p, axis=-1, keepdims=True)
        acc_ref[...] = alpha * acc_ref[...] + jnp.dot(
            p.astype(jnp.bfloat16), v_ref[...], preferred_element_type=jnp.float32)
        m_ref[...] = m_new

    @pl.when(ki == pl.num_programs(2) - 1)
    def _finalize():
        out = acc_ref[...] / l_ref[...]
        for g in range(group):                   # lane-dense (tq, group*dh) store
            o_ref[:, g * dh:(g + 1) * dh] = (
                out[g * tq:(g + 1) * tq, :].astype(o_ref.dtype))


# ------------------------------ wrappers --------------------------------------

def norm_qproj(x, gamma, w_q):
    t, h = x.shape
    n = w_q.shape[1]
    tm = _pick_tile(t, _TM, 8)
    tn = _pick_tile(n, _TN, 128)
    return pl.pallas_call(
        _norm_qproj_kernel,
        out_shape=jax.ShapeDtypeStruct((t, n), jnp.bfloat16),
        grid=(t // tm, n // tn),
        in_specs=[pl.BlockSpec((tm, h), lambda i, j: (i, 0)),
                  pl.BlockSpec((1, h), lambda i, j: (0, 0)),
                  pl.BlockSpec((h, tn), lambda i, j: (0, j))],
        out_specs=pl.BlockSpec((tm, tn), lambda i, j: (i, j)),
        scratch_shapes=[pltpu.VMEM((tm, h), jnp.bfloat16)],
        compiler_params=pltpu.CompilerParams(
            dimension_semantics=("parallel", "arbitrary"),
            vmem_limit_bytes=_VMEM_LIMIT),
    )(x, gamma, w_q)


def add_norm_qproj(x, res, gamma, w_q):
    t, h = x.shape
    n = w_q.shape[1]
    tm = _pick_tile(t, _TM, 8)
    tn = _pick_tile(n, _TN, 128)
    return pl.pallas_call(
        _add_norm_qproj_kernel,
        out_shape=(jax.ShapeDtypeStruct((t, n), jnp.bfloat16),
                   jax.ShapeDtypeStruct((t, h), res.dtype)),
        grid=(t // tm, n // tn),
        in_specs=[pl.BlockSpec((tm, h), lambda i, j: (i, 0)),
                  pl.BlockSpec((tm, h), lambda i, j: (i, 0)),
                  pl.BlockSpec((1, h), lambda i, j: (0, 0)),
                  pl.BlockSpec((h, tn), lambda i, j: (0, j))],
        out_specs=(pl.BlockSpec((tm, tn), lambda i, j: (i, j)),
                   pl.BlockSpec((tm, h), lambda i, j: (i, 0))),
        scratch_shapes=[pltpu.VMEM((tm, h), jnp.bfloat16)],
        compiler_params=pltpu.CompilerParams(
            dimension_semantics=("parallel", "arbitrary"),
            vmem_limit_bytes=_VMEM_LIMIT),
    )(x, res, gamma, w_q)


def oproj_add_rmsnorm(x, w_o, residual, gamma):
    m, kdim = x.shape
    h = w_o.shape[1]
    tm = _pick_tile(m, _TM, 8)
    tk = _pick_tile(kdim, _TK, 128)
    return pl.pallas_call(
        _oproj_add_norm_kernel,
        out_shape=(jax.ShapeDtypeStruct((m, h), jnp.bfloat16),
                   jax.ShapeDtypeStruct((m, h), residual.dtype)),
        grid=(m // tm, kdim // tk),
        in_specs=[pl.BlockSpec((tm, tk), lambda i, kk: (i, kk)),
                  pl.BlockSpec((tk, h), lambda i, kk: (kk, 0)),
                  pl.BlockSpec((tm, h), lambda i, kk: (i, 0)),
                  pl.BlockSpec((1, h), lambda i, kk: (0, 0))],
        out_specs=(pl.BlockSpec((tm, h), lambda i, kk: (i, 0)),
                   pl.BlockSpec((tm, h), lambda i, kk: (i, 0))),
        scratch_shapes=[pltpu.VMEM((tm, h), jnp.float32)],
        compiler_params=pltpu.CompilerParams(
            dimension_semantics=("parallel", "arbitrary"),
            vmem_limit_bytes=_VMEM_LIMIT),
    )(x, w_o, residual, gamma)


def mlp(x, w_gate_up, w_down, *, ti):
    m, h = x.shape
    inter = w_down.shape[0]
    tm = _pick_tile(m, _TM, 8)
    kernel = functools.partial(_mlp_kernel, ti=ti)
    return pl.pallas_call(
        kernel,
        out_shape=jax.ShapeDtypeStruct((m, h), jnp.float32),
        grid=(m // tm, inter // ti),
        in_specs=[pl.BlockSpec((tm, h), lambda i, j: (i, 0)),
                  pl.BlockSpec((h, 2 * ti), lambda i, j: (0, j)),
                  pl.BlockSpec((ti, h), lambda i, j: (j, 0))],
        out_specs=pl.BlockSpec((tm, h), lambda i, j: (i, 0)),
        scratch_shapes=[pltpu.VMEM((tm, h), jnp.float32)],
        compiler_params=pltpu.CompilerParams(
            dimension_semantics=("parallel", "arbitrary"),
            vmem_limit_bytes=_VMEM_LIMIT),
    )(x, w_gate_up, w_down)


def attention(q, k_t, v, cos, sin, *, nh, nkv, dh, scale):
    t = q.shape[0]
    group = nh // nkv
    tq = _pick_tile(t, _TQ, 8)
    tkv = _pick_tile(t, _TKV, 128)
    kernel = functools.partial(_attn_kernel, group=group, dh=dh, tq=tq, tkv=tkv,
                               scale=scale)

    def kv_limit(qi):
        # Last kv tile index containing any valid (non-future) column for q tile qi.
        return ((qi + 1) * tq - 1) // tkv

    return pl.pallas_call(
        kernel,
        out_shape=jax.ShapeDtypeStruct((t, nh * dh), jnp.bfloat16),
        grid=(nkv, t // tq, t // tkv),
        in_specs=[
            pl.BlockSpec((tq, group * dh), lambda j, qi, ki: (qi, j)),      # q
            # K (pre-transposed) / V: clamp the kv block index to the causal
            # boundary so fully masked tiles are never DMA'd (index repeats);
            # the compute pl.when predicate still skips their math.
            pl.BlockSpec((dh, tkv),
                         lambda j, qi, ki: (j, jnp.minimum(ki, kv_limit(qi)))),
            pl.BlockSpec((tkv, dh),
                         lambda j, qi, ki: (jnp.minimum(ki, kv_limit(qi)), j)),
            pl.BlockSpec((tq, dh), lambda j, qi, ki: (qi, 0)),              # cos
            pl.BlockSpec((tq, dh), lambda j, qi, ki: (qi, 0)),              # sin
        ],
        out_specs=pl.BlockSpec((tq, group * dh), lambda j, qi, ki: (qi, j)),
        scratch_shapes=[
            pltpu.VMEM((group * tq, dh), jnp.bfloat16),   # rope'd + scaled q
            pltpu.VMEM((group * tq, 1), jnp.float32),     # running max
            pltpu.VMEM((group * tq, 1), jnp.float32),     # running sum
            pltpu.VMEM((group * tq, dh), jnp.float32),    # output accumulator
        ],
        compiler_params=pltpu.CompilerParams(
            dimension_semantics=("parallel", "parallel", "arbitrary"),
            vmem_limit_bytes=_VMEM_LIMIT),
    )(q, k_t, v, cos, sin)


# --------------------------- glue (plain JAX) ---------------------------------

def rope_tables(positions, head_dim, theta=ROPE_THETA):
    d2 = head_dim // 2
    inv_freq = 1.0 / (theta ** (jnp.arange(0, d2, dtype=jnp.float32) * 2.0 / head_dim))
    freqs = positions.astype(jnp.float32)[:, None] * inv_freq[None, :]   # (T, d2)
    cos = jnp.concatenate([jnp.cos(freqs), jnp.cos(freqs)], axis=-1)     # (T, Dh)
    sin = jnp.concatenate([jnp.sin(freqs), jnp.sin(freqs)], axis=-1)
    return cos, sin


def prepare_params(raw):
    """One-time parameter prep: bf16 weights + per-tile gate/up packing."""
    h, inter = raw["w_gate"].shape
    ti = _pick_tile(inter, _TI, 128)
    nt = inter // ti
    wg = raw["w_gate"].astype(jnp.bfloat16).reshape(h, nt, ti)
    wu = raw["w_up"].astype(jnp.bfloat16).reshape(h, nt, ti)
    return {
        "input_ln": raw["input_ln"].astype(jnp.float32).reshape(1, -1),
        "post_ln": raw["post_ln"].astype(jnp.float32).reshape(1, -1),
        "w_q": raw["w_q"].astype(jnp.bfloat16),
        "w_o": raw["w_o"].astype(jnp.bfloat16),
        "w_gate_up": jnp.concatenate([wg, wu], axis=2).reshape(h, 2 * inter),
        "w_down": raw["w_down"].astype(jnp.bfloat16),
        "mlp_ti": ti,
    }


def llama_swiftkv_decoder_layer(positions, hidden_states, k_states, v_states,
                                residual, params, cfg):
    nh, nkv, dh = cfg["num_heads"], cfg["num_kv_heads"], cfg["head_dim"]
    t = hidden_states.shape[0]
    scale = dh ** -0.5

    # Input RMSNorm (+ residual add) fused into the q projection (SwiftKV: only
    # q is projected here; k/v arrive pre-projected).
    if residual is None:
        q = norm_qproj(hidden_states, params["input_ln"], params["w_q"])
        residual = hidden_states
    else:
        q, residual = add_norm_qproj(hidden_states, residual,
                                     params["input_ln"], params["w_q"])

    cos, sin = rope_tables(positions, dh)
    # One-time bf16 cast + per-head transpose of K so QK^T inside the kernel is
    # a plain (M, dh) x (dh, tkv) MXU matmul (no lane-dim contraction).
    k_t = (k_states.reshape(t, nkv, dh).astype(jnp.bfloat16)
           .transpose(1, 2, 0).reshape(nkv * dh, t))
    v_b = v_states.astype(jnp.bfloat16)

    attn = attention(q, k_t, v_b, cos, sin, nh=nh, nkv=nkv, dh=dh, scale=scale)

    # o_proj fused with residual add + post-attention RMSNorm.
    normed2, residual = oproj_add_rmsnorm(attn, params["w_o"], residual,
                                          params["post_ln"])
    hidden_out = mlp(normed2, params["w_gate_up"], params["w_down"],
                     ti=params["mlp_ti"])
    return hidden_out, residual


# --------------------------- pure-JAX reference --------------------------------

def ref_decoder_layer(positions, hidden_states, k_states, v_states, residual,
                      raw_params, cfg):
    def rms(x, w):
        xf = x.astype(jnp.float32)
        var = jnp.mean(xf * xf, axis=-1, keepdims=True)
        return (xf * lax.rsqrt(var + RMS_EPS) * w).astype(x.dtype)

    nh, nkv, dh = cfg["num_heads"], cfg["num_kv_heads"], cfg["head_dim"]
    t = hidden_states.shape[0]
    scale = dh ** -0.5
    d2 = dh // 2

    if residual is None:
        residual = hidden_states
        h = rms(hidden_states, raw_params["input_ln"])
    else:
        residual = hidden_states + residual
        h = rms(residual, raw_params["input_ln"])

    q = h @ raw_params["w_q"]
    cos, sin = rope_tables(positions, dh)
    q_h = q.reshape(t, nh, dh)
    rot = jnp.concatenate([-q_h[..., d2:], q_h[..., :d2]], axis=-1)
    q_h = q_h * cos[:, None, :] + rot * sin[:, None, :]
    group = nh // nkv
    k_rep = jnp.repeat(k_states.reshape(t, nkv, dh), group, axis=1)
    v_rep = jnp.repeat(v_states.reshape(t, nkv, dh), group, axis=1)
    s = jnp.einsum("tnd,snd->nts", q_h, k_rep) * scale
    mask = jnp.tril(jnp.ones((t, t), dtype=bool))
    s = jnp.where(mask[None], s, _NEG_INF)
    p = jax.nn.softmax(s, axis=-1)
    o = jnp.einsum("nts,snd->tnd", p, v_rep).reshape(t, nh * dh)
    h = o @ raw_params["w_o"]

    residual = h + residual
    h = rms(residual, raw_params["post_ln"])
    g = h @ raw_params["w_gate"]
    u = h @ raw_params["w_up"]
    h = (jax.nn.silu(g) * u) @ raw_params["w_down"]
    return h, residual


# --------------------------------- main ----------------------------------------

if __name__ == "__main__":
    T, H = 256, 256
    NH, NKV, DH = 4, 2, 128
    INTER = 512
    cfg = dict(num_heads=NH, num_kv_heads=NKV, head_dim=DH)

    key = jax.random.PRNGKey(0)
    ks = jax.random.split(key, 16)
    raw_params = {
        "input_ln": 1.0 + 0.1 * jax.random.normal(ks[0], (H,), jnp.float32),
        "post_ln":  1.0 + 0.1 * jax.random.normal(ks[1], (H,), jnp.float32),
        "w_q":    0.05 * jax.random.normal(ks[2], (H, NH * DH), jnp.float32),
        "w_o":    0.05 * jax.random.normal(ks[3], (NH * DH, H), jnp.float32),
        "w_gate": 0.05 * jax.random.normal(ks[4], (H, INTER), jnp.float32),
        "w_up":   0.05 * jax.random.normal(ks[5], (H, INTER), jnp.float32),
        "w_down": 0.05 * jax.random.normal(ks[6], (INTER, H), jnp.float32),
    }
    params = prepare_params(raw_params)

    positions = jnp.arange(T, dtype=jnp.int32)
    hidden1 = jax.random.normal(ks[7], (T, H), jnp.float32)
    k1 = jax.random.normal(ks[8], (T, NKV * DH), jnp.float32)
    v1 = jax.random.normal(ks[9], (T, NKV * DH), jnp.float32)

    hidden2 = jax.random.normal(ks[10], (T, H), jnp.float32)
    res2_in = jax.random.normal(ks[11], (T, H), jnp.float32)
    k2 = jax.random.normal(ks[12], (T, NKV * DH), jnp.float32)
    v2 = jax.random.normal(ks[13], (T, NKV * DH), jnp.float32)

    # Branch 1: residual is None (first SwiftKV layer).
    out1, res1 = llama_swiftkv_decoder_layer(positions, hidden1, k1, v1, None,
                                             params, cfg)
    # Branch 2: residual provided (subsequent layers).
    out2, res2 = llama_swiftkv_decoder_layer(positions, hidden2, k2, v2, res2_in,
                                             params, cfg)
    jax.block_until_ready((out1, res1, out2, res2))

    ref_out1, ref_res1 = ref_decoder_layer(positions, hidden1, k1, v1, None,
                                           raw_params, cfg)
    ref_out2, ref_res2 = ref_decoder_layer(positions, hidden2, k2, v2, res2_in,
                                           raw_params, cfg)

    for got, want, name in [(out1, ref_out1, "out1"), (res1, ref_res1, "res1"),
                            (out2, ref_out2, "out2"), (res2, ref_res2, "res2")]:
        err = float(jnp.max(jnp.abs(got - want)))
        assert jnp.allclose(got, want, atol=2.5e-2, rtol=2.5e-2), (name, err)

    print("KERNEL_OK")
</pallas_src>

<mosaic_0001>
module attributes {stable_mosaic.version = 11 : i64} {
  func.func @_norm_qproj_kernel(%arg0: i32, %arg1: i32, %arg2: memref<128x256xf32, #tpu.memory_space<vmem>>, %arg3: memref<1x256xf32, #tpu.memory_space<vmem>>, %arg4: memref<256x512xbf16, #tpu.memory_space<vmem>>, %arg5: memref<128x512xbf16, #tpu.memory_space<vmem>>, %arg6: memref<128x256xbf16, #tpu.memory_space<vmem>>) attributes {dimension_semantics = [#tpu.dimension_semantics<parallel>, #tpu.dimension_semantics<arbitrary>], iteration_bounds = array<i64: 2, 1>, scalar_prefetch = 0 : i64, scratch_operands = 1 : i64, tpu.core_type = #tpu.core_type<tc>, window_params = [{transform_indices = @transform_0, window_bounds = array<i64: 128, 256>}, {pipeline_mode = #tpu.pipeline_mode<synchronous>, transform_indices = @transform_1, window_bounds = array<i64: 1, 256>}, {transform_indices = @transform_2, window_bounds = array<i64: 256, 512>}, {transform_indices = @transform_3, window_bounds = array<i64: 128, 512>}]} {
    %c0_i32 = arith.constant 0 : i32
    %0 = arith.cmpi eq, %arg1, %c0_i32 : i32
    %1 = arith.extui %0 : i1 to i32
    %c0_i32_0 = arith.constant 0 : i32
    %2 = arith.cmpi ne, %1, %c0_i32_0 : i32
    scf.if %2 {
      %c0_6 = arith.constant 0 : index
      %c0_7 = arith.constant 0 : index
      %8 = vector.load %arg2[%c0_6, %c0_7] : memref<128x256xf32, #tpu.memory_space<vmem>>, vector<128x256xf32>
      %9 = arith.mulf %8, %8 : vector<128x256xf32>
      %cst_8 = arith.constant dense<0.000000e+00> : vector<128xf32>
      %10 = vector.multi_reduction <add>, %9, %cst_8 [1] : vector<128x256xf32> to vector<128xf32>
      %11 = vector.shape_cast %10 : vector<128xf32> to vector<128x1xf32>
      %cst_9 = arith.constant 2.560000e+02 : f32
      %12 = vector.broadcast %cst_9 : f32 to vector<128x1xf32>
      %13 = arith.divf %11, %12 : vector<128x1xf32>
      %cst_10 = arith.constant 9.99999997E-7 : f32
      %14 = vector.broadcast %cst_10 : f32 to vector<128x1xf32>
      %15 = arith.addf %13, %14 : vector<128x1xf32>
      %16 = math.rsqrt %15 : vector<128x1xf32>
      %17 = vector.broadcast %16 : vector<128x1xf32> to vector<128x256xf32>
      %18 = arith.mulf %8, %17 : vector<128x256xf32>
      %c0_11 = arith.constant 0 : index
      %c0_12 = arith.constant 0 : index
      %19 = vector.load %arg3[%c0_11, %c0_12] : memref<1x256xf32, #tpu.memory_space<vmem>>, vector<1x256xf32>
      %20 = vector.broadcast %19 : vector<1x256xf32> to vector<128x256xf32>
      %21 = arith.mulf %18, %20 : vector<128x256xf32>
      %22 = arith.truncf %21 : vector<128x256xf32> to vector<128x256xbf16>
      %c0_13 = arith.constant 0 : index
      %c0_14 = arith.constant 0 : index
      %23 = vector.load %arg6[%c0_13, %c0_14] : memref<128x256xbf16, #tpu.memory_space<vmem>>, vector<128x256xbf16>
      tpu.vector_store %arg6[%c0_13, %c0_14], %22 {strides = array<i32>} : memref<128x256xbf16, #tpu.memory_space<vmem>>, vector<128x256xbf16>,
    } else {
    }
    %c0 = arith.constant 0 : index
    %c0_1 = arith.constant 0 : index
    %3 = vector.load %arg6[%c0, %c0_1] : memref<128x256xbf16, #tpu.memory_space<vmem>>, vector<128x256xbf16>
    %c0_2 = arith.constant 0 : index
    %c0_3 = arith.constant 0 : index
    %4 = vector.load %arg4[%c0_2, %c0_3] : memref<256x512xbf16, #tpu.memory_space<vmem>>, vector<256x512xbf16>
    %cst = arith.constant dense<0.000000e+00> : vector<128x512xf32>
    %5 = tpu.matmul %3, %4, %cst {dimension_numbers = #tpu.dot_dimension_numbers<[1], [0], [0], [1], [0, 0, 1, 1], [], []>} : vector<128x256xbf16>, vector<256x512xbf16>, vector<128x512xf32> -> vector<128x512xf32>
    %6 = arith.truncf %5 : vector<128x512xf32> to vector<128x512xbf16>
    %c0_4 = arith.constant 0 : index
    %c0_5 = arith.constant 0 : index
    %7 = vector.load %arg5[%c0_4, %c0_5] : memref<128x512xbf16, #tpu.memory_space<vmem>>, vector<128x512xbf16>
    tpu.vector_store %arg5[%c0_4, %c0_5], %6 {strides = array<i32>} : memref<128x512xbf16, #tpu.memory_space<vmem>>, vector<128x512xbf16>,
    return
  }
  func.func @transform_0(%arg0: i32, %arg1: i32) -> (i32, i32) {
    %c0_i32 = arith.constant 0 : i32
    %c0_i32_0 = arith.constant 0 : i32
    return %arg0, %c0_i32 : i32, i32
  }
  func.func @transform_1(%arg0: i32, %arg1: i32) -> (i32, i32) {
    %c0_i32 = arith.constant 0 : i32
    %c0_i32_0 = arith.constant 0 : i32
    %c0_i32_1 = arith.constant 0 : i32
    return %c0_i32, %c0_i32_0 : i32, i32
  }
  func.func @transform_2(%arg0: i32, %arg1: i32) -> (i32, i32) {
    %c0_i32 = arith.constant 0 : i32
    %c0_i32_0 = arith.constant 0 : i32
    return %c0_i32, %arg1 : i32, i32
  }
  func.func @transform_3(%arg0: i32, %arg1: i32) -> (i32, i32) {
    %c0_i32 = arith.constant 0 : i32
    return %arg0, %arg1 : i32, i32
  }
}

</mosaic_0001>

<llo_original>
// kernel: tpu_custom_call.1
$region0: #{tpu_custom_call.1}
  #allocation0 [shape = 'u32[]', space=smem, size = 0x4, offset = 0x4, fixed_abs, tag = 'smem constant byte address 0x4 - core index']
  #allocation1 [shape = 'u32[144,128]{1,0:T(1,128)}', space=vmem, size = 0x12000, scoped, tag = 'internal scratch']
  #allocation2 [shape = 'bf16[128,256]{1,0:T(16,128)(2,1)}', space=vmem, size = 0x10000, scoped, tag = 'scratch operand']
  %s0 = inlined_call_operand.hbm [shape: f32[256,256], index: 0, kind: input, shape index: {}]
  %s1 = inlined_call_operand.vmem [shape: f32[1,256], index: 1, kind: input, shape index: {}]
  %s2 = inlined_call_operand.hbm [shape: bf16[256,512], index: 2, kind: input, shape index: {}]
  %s3 = inlined_call_operand.hbm [shape: bf16[256,512], index: 3, kind: output, shape index: {}]
  %s4 = sld [smem:[#allocation0]]
  $region57: #{tpu_custom_call.1} parent=0
    _
  %s6 = ssub.s32 1, %s4
  %s7 = scalar_select 0, %s6, %s4
  $region1: #{tpu_custom_call.1} parent=0
    #allocation3 [shape = 'u8[262144]{0}', space=vmem, size = 0x40000, scoped, tag = 'input window, operand 0']
    #allocation4 [shape = 's32[2]{0}', space=sflag, size = 0x8, scoped, tag = 'scoped memory for tpu_custom_call.1']
    #allocation5 [shape = 's32[2]{0}', space=sflag, size = 0x8, scoped, tag = 'scoped memory for tpu_custom_call.1']
    #allocation6 [shape = 'u8[262144]{0}', space=vmem, size = 0x40000, scoped, tag = 'input window, operand 2, single buffered']
    #allocation7 [shape = 's32[1]{0}', space=sflag, size = 0x4, scoped, tag = 'scoped memory for tpu_custom_call.1']
    #allocation8 [shape = 'u8[262144]{0}', space=vmem, size = 0x40000, scoped, tag = 'output window, operand 0']
    %8 = vsyncpa [#allocation4], 0
    %s9 = scalar_lea.sflag [#allocation4], 1
    %10 = vsyncpa %s9, 0
    %11 = vsyncpa [#allocation7], 0
    %12 = vsyncpa [#allocation5], 0
    %s13 = scalar_lea.sflag [#allocation5], 1
    %14 = vsyncpa %s13, 0
    loop: start=0, step=1, limit=4
    $region2: #{tpu_custom_call.1} parent=1 // loop_pre_header
      _
    $region3: #{tpu_custom_call.1} parent=1 // loop_header
      %s16 = sphi 0, %s20
      %p17 = scmp.ge.s32.totalorder %s16, 4
      %s23 = sphi 0, %s35
      %s24 = sphi 0, %s31
      %s25 = sphi 0, %s23
      %s26 = sphi 0, %s24
      %s27 = sphi 0, %s25
      %s28 = sphi 0, %s26
      %s38 = sphi 0, %s40
      %s41 = sphi 0, %s38
      %s42 = sphi 0, %s41
      %s58 = sphi 0, %s42
      %s62 = sphi 0, %s62
      %s64 = sphi 0, %s62
      %s65 = sphi 0, %s64
      %s79 = sphi 0, %s65
      %s85 = sphi 0, %s87
      %s88 = sphi 0, %s85
      %s89 = sphi 0, %s88
      %s105 = sphi 0, %s89
      %s113 = sphi 0, %s115
      %s116 = sphi 0, %s113
      %s117 = sphi 0, %s116
      %s133 = sphi 0, %s117
    $region4: #{tpu_custom_call.1} parent=1 // loop_header_branch
      %19 = sbr.rel (%p17) target = $region8
    $region5: #{tpu_custom_call.1} parent=1 // loop_body
      %s21 = ssub.s32 %s16, 1
      %s22 = ssub.s32 %s16, 2
      %s29 = sadd.s32 1, %s24
      %p30 = scmp.ge.s32.totalorder %s29, 1
      %s31 = scalar_select %p30, 0, %s29
      %s32 = sadd.s32 1, %s23
      %s33 = scalar_select %p30, %s32, %s23
      %p34 = scmp.ge.s32.totalorder %s33, 2
      %s35 = scalar_select %p34, 0, %s33
      %s36 = ssub.s32 %s23, %s35
      %p37 = scmp.eq.s32.totalorder %s36, 0
      %s39 = sadd.s32 %s38, 1
      %s40 = scalar_select %p37, %s38, %s39
      %p43 = pneg %p37
      %p44 = scmp.eq.s32.totalorder %s16, 1
      %p45 = por %p43, %p44
      %p46 = scmp.ne.s32.totalorder %s38, %s41
      %p47 = scmp.eq.s32.totalorder %s16, 0
      %p48 = por %p46, %p47
      %p49 = scmp.ne.s32.totalorder %s38, %s41
      %p50 = scmp.eq.s32.totalorder %s21, 1
      %p51 = por %p49, %p50
      %p52 = scmp.ne.s32.totalorder %s41, %s42
      %p53 = scmp.eq.s32.totalorder %s21, 0
      %p54 = por %p52, %p53
      %p55 = scmp.ne.s32.totalorder %s41, %s42
      %p56 = scmp.eq.s32.totalorder %s22, 1
      %p57 = por %p55, %p56
      %p59 = scmp.ne.s32.totalorder %s42, %s58
      %p60 = scmp.eq.s32.totalorder %s22, 0
      %p61 = por %p59, %p60
      %s63 = sadd.s32 %s62, 1
      %p66 = scmp.eq.s32.totalorder %s16, 1
      %p67 = scmp.ne.s32.totalorder %s62, %s64
      %p68 = scmp.eq.s32.totalorder %s16, 0
      %p69 = por %p67, %p68
      %p70 = scmp.ne.s32.totalorder %s62, %s64
      %p71 = scmp.eq.s32.totalorder %s21, 1
      %p72 = por %p70, %p71
      %p73 = scmp.ne.s32.totalorder %s64, %s65
      %p74 = scmp.eq.s32.totalorder %s21, 0
      %p75 = por %p73, %p74
      %p76 = scmp.ne.s32.totalorder %s64, %s65
      %p77 = scmp.eq.s32.totalorder %s22, 1
      %p78 = por %p76, %p77
      %p80 = scmp.ne.s32.totalorder %s65, %s79
      %p81 = scmp.eq.s32.totalorder %s22, 0
      %p82 = por %p80, %p81
      %s83 = ssub.s32 %s24, %s31
      %p84 = scmp.eq.s32.totalorder %s83, 0
      %s86 = sadd.s32 %s85, 1
      %s87 = scalar_select %p84, %s85, %s86
      %p90 = pneg %p84
      %p91 = scmp.eq.s32.totalorder %s16, 1
      %p92 = por %p90, %p91
      %p93 = scmp.ne.s32.totalorder %s85, %s88
      %p94 = scmp.eq.s32.totalorder %s16, 0
      %p95 = por %p93, %p94
      %p96 = scmp.ne.s32.totalorder %s85, %s88
      %p97 = scmp.eq.s32.totalorder %s21, 1
      %p98 = por %p96, %p97
      %p99 = scmp.ne.s32.totalorder %s88, %s89
      %p100 = scmp.eq.s32.totalorder %s21, 0
      %p101 = por %p99, %p100
      %p102 = scmp.ne.s32.totalorder %s88, %s89
      %p103 = scmp.eq.s32.totalorder %s22, 1
      %p104 = por %p102, %p103
      %p106 = scmp.ne.s32.totalorder %s89, %s105
      %p107 = scmp.eq.s32.totalorder %s22, 0
      %p108 = por %p106, %p107
      %s109 = ssub.s32 %s23, %s35
      %s110 = ssub.s32 %s24, %s31
      %s111 = sor.u32 %s109, %s110
      %p112 = scmp.eq.s32.totalorder %s111, 0
      %s114 = sadd.s32 %s113, 1
      %s115 = scalar_select %p112, %s113, %s114
      %p118 = pneg %p112
      %p119 = scmp.eq.s32.totalorder %s16, 1
      %p120 = por %p118, %p119
      %p121 = scmp.ne.s32.totalorder %s113, %s116
      %p122 = scmp.eq.s32.totalorder %s16, 0
      %p123 = por %p121, %p122
      %p124 = scmp.ne.s32.totalorder %s113, %s116
      %p125 = scmp.eq.s32.totalorder %s21, 1
      %p126 = por %p124, %p125
      %p127 = scmp.ne.s32.totalorder %s116, %s117
      %p128 = scmp.eq.s32.totalorder %s21, 0
      %p129 = por %p127, %p128
      %p130 = scmp.ne.s32.totalorder %s116, %s117
      %p131 = scmp.eq.s32.totalorder %s22, 1
      %p132 = por %p130, %p131
      %p134 = scmp.ne.s32.totalorder %s117, %s133
      %p135 = scmp.eq.s32.totalorder %s22, 0
      %p136 = por %p134, %p135
      %p137 = scmp.le.s32.totalorder 1, %s16
      %p138 = scmp.lt.s32.totalorder %s16, 3
      %p139 = pnand %p137, %p138
      %p140 = pneg %p139
      // Predicated region
      $region9: #{tpu_custom_call.1} parent=5 // pred_check
        _
      $region10: #{tpu_custom_call.1} parent=5 // pred_check_branch
        %142 = sbr.rel (%p139) target = $region12
      $region11: #{tpu_custom_call.1} parent=5 // pred_region
        %s143 = ssub.s32 %s16, 1
        // Predicated region
        $region13: #{tpu_custom_call.1} parent=11 // pred_check
          %p144 = pneg %p75
        $region14: #{tpu_custom_call.1} parent=11 // pred_check_branch
          %146 = sbr.rel (%p144) target = $region16
        $region15: #{tpu_custom_call.1} parent=11 // pred_region
          _
        $region16: #{tpu_custom_call.1} parent=11 // pred_fallthru
          _
        // Predicated region
        $region17: #{tpu_custom_call.1} parent=11 // pred_check
          %p147 = pneg %p101
        $region18: #{tpu_custom_call.1} parent=11 // pred_check_branch
          %149 = sbr.rel (%p147) target = $region20
        $region19: #{tpu_custom_call.1} parent=11 // pred_region
          %s150 = smul.u32 4, %s26
          %s152 = ssub.s32 8192, 8192
          %153 = vsyncadd [#allocation7], %s152
          %s154 = smul.addr %s150, 64
          %s155 = scalar_lea.hbm %s2, %s154
          %s156 = sshll.u32 [#allocation6], 4
          %s157 = int_to_ptr.vmem [resolvable:$true] %s156
          %162 = dma.hbm_to_vmem [thread:$0]  %s155, 8192, %s157, [#allocation7], 256, 256, 16
        $region20: #{tpu_custom_call.1} parent=11 // pred_fallthru
          _
      $region12: #{tpu_custom_call.1} parent=5 // pred_fallthru
        _
      %p163 = scmp.lt.s32.totalorder %s16, 2
      // Predicated region
      $region21: #{tpu_custom_call.1} parent=5 // pred_check
        %p164 = pneg %p163
      $region22: #{tpu_custom_call.1} parent=5 // pred_check_branch
        %166 = sbr.rel (%p164) target = $region24
      $region23: #{tpu_custom_call.1} parent=5 // pred_region
        // Predicated region
        $region25: #{tpu_custom_call.1} parent=23 // pred_check
          %p167 = pneg %p48
        $region26: #{tpu_custom_call.1} parent=23 // pred_check_branch
          %169 = sbr.rel (%p167) target = $region28
        $region27: #{tpu_custom_call.1} parent=23 // pred_region
          %s170 = sand.u32 %s38, 1
          %s171 = scalar_lea.sflag [#allocation4], %s170
          %s172 = sand.u32 %s38, 1
          %s173 = smul.addr %s172, 256
          %s174 = scalar_lea.vmem [#allocation3], %s173
          %s175 = smul.u32 16, %s23
          %s177 = ssub.s32 4096, 4096
          %178 = vsyncadd %s171, %s177
          %s179 = smul.addr %s175, 2
          %s180 = smul.addr %s179, 128
          %s181 = scalar_lea.hbm %s0, %s180
          %s182 = sshll.u32 %s174, 4
          %s183 = int_to_ptr.vmem [resolvable:$true] %s182
          %188 = dma.hbm_to_vmem [thread:$0]  %s181, 4096, %s183, %s171, 256, 256, 16
        $region28: #{tpu_custom_call.1} parent=23 // pred_fallthru
          _
      $region24: #{tpu_custom_call.1} parent=5 // pred_fallthru
        _
      %p189 = scmp.le.s32.totalorder 1, %s16
      %p190 = scmp.lt.s32.totalorder %s16, 3
      %p191 = pnand %p189, %p190
      %p192 = pneg %p191
      // Predicated region
      $region29: #{tpu_custom_call.1} parent=5 // pred_check
        _
      $region30: #{tpu_custom_call.1} parent=5 // pred_check_branch
        %194 = sbr.rel (%p191) target = $region32
      $region31: #{tpu_custom_call.1} parent=5 // pred_region
        %s195 = ssub.s32 %s16, 1
        %s196 = sand.u32 %s41, 1
        %s197 = scalar_lea.sflag [#allocation4], %s196
        %s198 = sand.u32 %s41, 1
        %s199 = smul.addr %s198, 256
        %s200 = scalar_lea.vmem [#allocation3], %s199
        // Predicated region
        $region33: #{tpu_custom_call.1} parent=31 // pred_check
          %p201 = pneg %p54
        $region34: #{tpu_custom_call.1} parent=31 // pred_check_branch
          %203 = sbr.rel (%p201) target = $region36
        $region35: #{tpu_custom_call.1} parent=31 // pred_region
          %204 = dma.done %s197, 4096
        $region36: #{tpu_custom_call.1} parent=31 // pred_fallthru
          _
        // Predicated region
        $region37: #{tpu_custom_call.1} parent=31 // pred_check
          %p205 = pneg %p101
        $region38: #{tpu_custom_call.1} parent=31 // pred_check_branch
          %207 = sbr.rel (%p205) target = $region40
        $region39: #{tpu_custom_call.1} parent=31 // pred_region
          %208 = dma.done [#allocation7], 8192
        $region40: #{tpu_custom_call.1} parent=31 // pred_fallthru
          _
        %s209 = sand.u32 %s41, 1
        %s210 = scalar_lea.sflag [#allocation4], %s209
        %s211 = sand.u32 %s41, 1
        %s212 = smul.addr %s211, 256
        %s213 = scalar_lea.vmem [#allocation3], %s212
        %p214 = pneg %p54
        %p215 = pneg %p51
        %p216 = pneg %p75
        %p217 = pneg %p72
        %p218 = pneg %p101
        %p219 = pneg %p98
        %p220 = pneg %p129
        %p221 = pneg %p126
        %s222 = sand.u32 %s116, 1
        %s223 = scalar_lea.sflag [#allocation5], %s222
        %s224 = sand.u32 %s116, 1
        %s225 = smul.addr %s224, 256
        %s226 = scalar_lea.vmem [#allocation8], %s225
        %s227 = smul.u32 16, %s25
        %s228 = smul.u32 4, %s26
        %s229 = smul.u32 16, %s25
        %s230 = smul.u32 4, %s26
        %p231 = scmp.eq.s32.totalorder %s26, 0
        // Predicated region
        $region41: #{tpu_custom_call.1} parent=31 // pred_check
          %p232 = pneg %p231
        $region42: #{tpu_custom_call.1} parent=31 // pred_check_branch
          %234 = sbr.rel (%p232) target = $region44
        $region43: #{tpu_custom_call.1} parent=31 // pred_region
          %v235 = vld [vmem:[%s200] sm:$0xff]
          %v236 = vld [vmem:[%s200 + $0x8] sm:$0xff]
          %v237 = vld [vmem:[%s200 + $0x10] sm:$0xff]
          %v238 = vld [vmem:[%s200 + $0x18] sm:$0xff]
          %v239 = vld [vmem:[%s200 + $0x20] sm:$0xff]
          %v240 = vld [vmem:[%s200 + $0x28] sm:$0xff]
          %v241 = vld [vmem:[%s200 + $0x30] sm:$0xff]
          %v242 = vld [vmem:[%s200 + $0x38] sm:$0xff]
          %v243 = vld [vmem:[%s200 + $0x40] sm:$0xff]
          %v244 = vld [vmem:[%s200 + $0x48] sm:$0xff]
          %v245 = vld [vmem:[%s200 + $0x50] sm:$0xff]
          %v246 = vld [vmem:[%s200 + $0x58] sm:$0xff]
          %v247 = vld [vmem:[%s200 + $0x60] sm:$0xff]
          %v248 = vld [vmem:[%s200 + $0x68] sm:$0xff]
          %v249 = vld [vmem:[%s200 + $0x70] sm:$0xff]
          %v250 = vld [vmem:[%s200 + $0x78] sm:$0xff]
          %v251 = vld [vmem:[%s200 + $0x80] sm:$0xff]
          %v252 = vld [vmem:[%s200 + $0x88] sm:$0xff]
          %v253 = vld [vmem:[%s200 + $0x90] sm:$0xff]
          %v254 = vld [vmem:[%s200 + $0x98] sm:$0xff]
          %v255 = vld [vmem:[%s200 + $0xa0] sm:$0xff]
          %v256 = vld [vmem:[%s200 + $0xa8] sm:$0xff]
          %v257 = vld [vmem:[%s200 + $0xb0] sm:$0xff]
          %v258 = vld [vmem:[%s200 + $0xb8] sm:$0xff]
          %v259 = vld [vmem:[%s200 + $0xc0] sm:$0xff]
          %v260 = vld [vmem:[%s200 + $0xc8] sm:$0xff]
          %v261 = vld [vmem:[%s200 + $0xd0] sm:$0xff]
          %v262 = vld [vmem:[%s200 + $0xd8] sm:$0xff]
          %v263 = vld [vmem:[%s200 + $0xe0] sm:$0xff]
          %v264 = vld [vmem:[%s200 + $0xe8] sm:$0xff]
          %v265 = vld [vmem:[%s200 + $0xf0] sm:$0xff]
          %v266 = vld [vmem:[%s200 + $0xf8] sm:$0xff]
          %v267 = vmul.f32 %v235, %v235
          %v268 = vmul.f32 %v236, %v236
          %v269 = vmul.f32 %v237, %v237
          %v270 = vmul.f32 %v238, %v238
          %v271 = vmul.f32 %v239, %v239
          %v272 = vmul.f32 %v240, %v240
          %v273 = vmul.f32 %v241, %v241
          %v274 = vmul.f32 %v242, %v242
          %v275 = vmul.f32 %v243, %v243
          %v276 = vmul.f32 %v244, %v244
          %v277 = vmul.f32 %v245, %v245
          %v278 = vmul.f32 %v246, %v246
          %v279 = vmul.f32 %v247, %v247
          %v280 = vmul.f32 %v248, %v248
          %v281 = vmul.f32 %v249, %v249
          %v282 = vmul.f32 %v250, %v250
          %v283 = vmul.f32 %v251, %v251
          %v284 = vmul.f32 %v252, %v252
          %v285 = vmul.f32 %v253, %v253
          %v286 = vmul.f32 %v254, %v254
          %v287 = vmul.f32 %v255, %v255
          %v288 = vmul.f32 %v256, %v256
          %v289 = vmul.f32 %v257, %v257
          %v290 = vmul.f32 %v258, %v258
          %v291 = vmul.f32 %v259, %v259
          %v292 = vmul.f32 %v260, %v260
          %v293 = vmul.f32 %v261, %v261
          %v294 = vmul.f32 %v262, %v262
          %v295 = vmul.f32 %v263, %v263
          %v296 = vmul.f32 %v264, %v264
          %v297 = vmul.f32 %v265, %v265
          %v298 = vmul.f32 %v266, %v266
          %v299 = vadd.f32 %v267, %v268
          %300 = vadd.xlane.f32.xlu0 %v299
          %v301 = vpop.xlane.xlu0 %300
          %v302 = vadd.f32 %v269, %v270
          %303 = vadd.xlane.f32.xlu0 %v302
          %v304 = vpop.xlane.xlu0 %303
          %v305 = vadd.f32 %v271, %v272
          %306 = vadd.xlane.f32.xlu0 %v305
          %v307 = vpop.xlane.xlu0 %306
          %v308 = vadd.f32 %v273, %v274
          %309 = vadd.xlane.f32.xlu0 %v308
          %v310 = vpop.xlane.xlu0 %309
          %v311 = vadd.f32 %v275, %v276
          %312 = vadd.xlane.f32.xlu0 %v311
          %v313 = vpop.xlane.xlu0 %312
          %v314 = vadd.f32 %v277, %v278
          %315 = vadd.xlane.f32.xlu0 %v314
          %v316 = vpop.xlane.xlu0 %315
          %v317 = vadd.f32 %v279, %v280
          %318 = vadd.xlane.f32.xlu0 %v317
          %v319 = vpop.xlane.xlu0 %318
          %v320 = vadd.f32 %v281, %v282
          %321 = vadd.xlane.f32.xlu0 %v320
          %v322 = vpop.xlane.xlu0 %321
          %v323 = vadd.f32 %v283, %v284
          %324 = vadd.xlane.f32.xlu0 %v323
          %v325 = vpop.xlane.xlu0 %324
          %v326 = vadd.f32 %v285, %v286
          %327 = vadd.xlane.f32.xlu0 %v326
          %v328 = vpop.xlane.xlu0 %327
          %v329 = vadd.f32 %v287, %v288
          %330 = vadd.xlane.f32.xlu0 %v329
          %v331 = vpop.xlane.xlu0 %330
          %v332 = vadd.f32 %v289, %v290
          %333 = vadd.xlane.f32.xlu0 %v332
          %v334 = vpop.xlane.xlu0 %333
          %v335 = vadd.f32 %v291, %v292
          %336 = vadd.xlane.f32.xlu0 %v335
          %v337 = vpop.xlane.xlu0 %336
          %v338 = vadd.f32 %v293, %v294
          %339 = vadd.xlane.f32.xlu0 %v338
          %v340 = vpop.xlane.xlu0 %339
          %v341 = vadd.f32 %v295, %v296
          %342 = vadd.xlane.f32.xlu0 %v341
          %v343 = vpop.xlane.xlu0 %342
          %v344 = vadd.f32 %v297, %v298
          %345 = vadd.xlane.f32.xlu0 %v344
          %v346 = vpop.xlane.xlu0 %345
          %v347 = vrcp.pop 256.0
          %v348 = vmul.f32 %v301, %v347
          %v349 = vmul.f32 %v304, %v347
          %v350 = vmul.f32 %v307, %v347
          %v351 = vmul.f32 %v310, %v347
          %v352 = vmul.f32 %v313, %v347
          %v353 = vmul.f32 %v316, %v347
          %v354 = vmul.f32 %v319, %v347
          %v355 = vmul.f32 %v322, %v347
          %v356 = vmul.f32 %v325, %v347
          %v357 = vmul.f32 %v328, %v347
          %v358 = vmul.f32 %v331, %v347
          %v359 = vmul.f32 %v334, %v347
          %v360 = vmul.f32 %v337, %v347
          %v361 = vmul.f32 %v340, %v347
          %v362 = vmul.f32 %v343, %v347
          %v363 = vmul.f32 %v346, %v347
          %v364 = vadd.f32 %v348, 1e-06
          %v365 = vadd.f32 %v349, 1e-06
          %v366 = vadd.f32 %v350, 1e-06
          %v367 = vadd.f32 %v351, 1e-06
          %v368 = vadd.f32 %v352, 1e-06
          %v369 = vadd.f32 %v353, 1e-06
          %v370 = vadd.f32 %v354, 1e-06
          %v371 = vadd.f32 %v355, 1e-06
          %v372 = vadd.f32 %v356, 1e-06
          %v373 = vadd.f32 %v357, 1e-06
          %v374 = vadd.f32 %v358, 1e-06
          %v375 = vadd.f32 %v359, 1e-06
          %v376 = vadd.f32 %v360, 1e-06
          %v377 = vadd.f32 %v361, 1e-06
          %v378 = vadd.f32 %v362, 1e-06
          %v379 = vadd.f32 %v363, 1e-06
          %v380 = vrsqrt.pop %v364
          %v381 = vrsqrt.pop %v365
          %v382 = vrsqrt.pop %v366
          %v383 = vrsqrt.pop %v367
          %v384 = vrsqrt.pop %v368
          %v385 = vrsqrt.pop %v369
          %v386 = vrsqrt.pop %v370
          %v387 = vrsqrt.pop %v371
          %v388 = vrsqrt.pop %v372
          %v389 = vrsqrt.pop %v373
          %v390 = vrsqrt.pop %v374
          %v391 = vrsqrt.pop %v375
          %v392 = vrsqrt.pop %v376
          %v393 = vrsqrt.pop %v377
          %v394 = vrsqrt.pop %v378
          %v395 = vrsqrt.pop %v379
          %v396 = vmul.f32 %v235, %v380
          %v397 = vmul.f32 %v236, %v380
          %v398 = vmul.f32 %v237, %v381
          %v399 = vmul.f32 %v238, %v381
          %v400 = vmul.f32 %v239, %v382
          %v401 = vmul.f32 %v240, %v382
          %v402 = vmul.f32 %v241, %v383
          %v403 = vmul.f32 %v242, %v383
          %v404 = vmul.f32 %v243, %v384
          %v405 = vmul.f32 %v244, %v384
          %v406 = vmul.f32 %v245, %v385
          %v407 = vmul.f32 %v246, %v385
          %v408 = vmul.f32 %v247, %v386
          %v409 = vmul.f32 %v248, %v386
          %v410 = vmul.f32 %v249, %v387
          %v411 = vmul.f32 %v250, %v387
          %v412 = vmul.f32 %v251, %v388
          %v413 = vmul.f32 %v252, %v388
          %v414 = vmul.f32 %v253, %v389
          %v415 = vmul.f32 %v254, %v389
          %v416 = vmul.f32 %v255, %v390
          %v417 = vmul.f32 %v256, %v390
          %v418 = vmul.f32 %v257, %v391
          %v419 = vmul.f32 %v258, %v391
          %v420 = vmul.f32 %v259, %v392
          %v421 = vmul.f32 %v260, %v392
          %v422 = vmul.f32 %v261, %v393
          %v423 = vmul.f32 %v262, %v393
          %v424 = vmul.f32 %v263, %v394
          %v425 = vmul.f32 %v264, %v394
          %v426 = vmul.f32 %v265, %v395
          %v427 = vmul.f32 %v266, %v395
          %v428 = vld [vmem:[%s1] sm:$0x3]
          %v430 = vlaneseq
          %v431 = vshrl.u32 %v430, 7
          %v432 = vsub.s32 0, %v431
          %v433 = vrot.slane %v428, %v432
          %v434 = vlaneseq
          %v435 = vshrl.u32 %v434, 7
          %v436 = vsub.s32 1, %v435
          %v437 = vrot.slane %v428, %v436
          %v440 = vmul.f32 %v396, %v433
          %v441 = vmul.f32 %v397, %v437
          %v442 = vmul.f32 %v398, %v433
          %v443 = vmul.f32 %v399, %v437
          %v444 = vmul.f32 %v400, %v433
          %v445 = vmul.f32 %v401, %v437
          %v446 = vmul.f32 %v402, %v433
          %v447 = vmul.f32 %v403, %v437
          %v448 = vmul.f32 %v404, %v433
          %v449 = vmul.f32 %v405, %v437
          %v450 = vmul.f32 %v406, %v433
          %v451 = vmul.f32 %v407, %v437
          %v452 = vmul.f32 %v408, %v433
          %v453 = vmul.f32 %v409, %v437
          %v454 = vmul.f32 %v410, %v433
          %v455 = vmul.f32 %v411, %v437
          %v456 = vmul.f32 %v412, %v433
          %v457 = vmul.f32 %v413, %v437
          %v458 = vmul.f32 %v414, %v433
          %v459 = vmul.f32 %v415, %v437
          %v460 = vmul.f32 %v416, %v433
          %v461 = vmul.f32 %v417, %v437
          %v462 = vmul.f32 %v418, %v433
          %v463 = vmul.f32 %v419, %v437
          %v464 = vmul.f32 %v420, %v433
          %v465 = vmul.f32 %v421, %v437
          %v466 = vmul.f32 %v422, %v433
          %v467 = vmul.f32 %v423, %v437
          %v468 = vmul.f32 %v424, %v433
          %v469 = vmul.f32 %v425, %v437
          %v470 = vmul.f32 %v426, %v433
          %v471 = vmul.f32 %v427, %v437
          %v472 = vpack.c.bf16 %v442, %v440
          %v473 = vpack.c.bf16 %v443, %v441
          %v474 = vpack.c.bf16 %v446, %v444
          %v475 = vpack.c.bf16 %v447, %v445
          %v476 = vpack.c.bf16 %v450, %v448
          %v477 = vpack.c.bf16 %v451, %v449
          %v478 = vpack.c.bf16 %v454, %v452
          %v479 = vpack.c.bf16 %v455, %v453
          %v480 = vpack.c.bf16 %v458, %v456
          %v481 = vpack.c.bf16 %v459, %v457
          %v482 = vpack.c.bf16 %v462, %v460
          %v483 = vpack.c.bf16 %v463, %v461
          %v484 = vpack.c.bf16 %v466, %v464
          %v485 = vpack.c.bf16 %v467, %v465
          %v486 = vpack.c.bf16 %v470, %v468
          %v487 = vpack.c.bf16 %v471, %v469
          %488 = vst [vmem:[#allocation2] sm:$0xff] %v472
          %489 = vst [vmem:[#allocation2 + $0x8] sm:$0xff] %v473
          %490 = vst [vmem:[#allocation2 + $0x10] sm:$0xff] %v474
          %491 = vst [vmem:[#allocation2 + $0x18] sm:$0xff] %v475
          %492 = vst [vmem:[#allocation2 + $0x20] sm:$0xff] %v476
          %493 = vst [vmem:[#allocation2 + $0x28] sm:$0xff] %v477
          %494 = vst [vmem:[#allocation2 + $0x30] sm:$0xff] %v478
          %495 = vst [vmem:[#allocation2 + $0x38] sm:$0xff] %v479
          %496 = vst [vmem:[#allocation2 + $0x40] sm:$0xff] %v480
          %497 = vst [vmem:[#allocation2 + $0x48] sm:$0xff] %v481
          %498 = vst [vmem:[#allocation2 + $0x50] sm:$0xff] %v482
          %499 = vst [vmem:[#allocation2 + $0x58] sm:$0xff] %v483
          %500 = vst [vmem:[#allocation2 + $0x60] sm:$0xff] %v484
          %501 = vst [vmem:[#allocation2 + $0x68] sm:$0xff] %v485
          %502 = vst [vmem:[#allocation2 + $0x70] sm:$0xff] %v486
          %503 = vst [vmem:[#allocation2 + $0x78] sm:$0xff] %v487
        $region44: #{tpu_custom_call.1} parent=31 // pred_fallthru
          _
        %v504 = vld [vmem:[#allocation2] sm:$0xff]
        %v505 = vld [vmem:[#allocation2 + $0x8] sm:$0xff]
        %v506 = vld [vmem:[#allocation2 + $0x10] sm:$0xff]
        %v507 = vld [vmem:[#allocation2 + $0x18] sm:$0xff]
        %v508 = vld [vmem:[#allocation2 + $0x20] sm:$0xff]
        %v509 = vld [vmem:[#allocation2 + $0x28] sm:$0xff]
        %v510 = vld [vmem:[#allocation2 + $0x30] sm:$0xff]
        %v511 = vld [vmem:[#allocation2 + $0x38] sm:$0xff]
        %v512 = vld [vmem:[#allocation2 + $0x40] sm:$0xff]
        %v513 = vld [vmem:[#allocation2 + $0x48] sm:$0xff]
        %v514 = vld [vmem:[#allocation2 + $0x50] sm:$0xff]
        %v515 = vld [vmem:[#allocation2 + $0x58] sm:$0xff]
        %v516 = vld [vmem:[#allocation2 + $0x60] sm:$0xff]
        %v517 = vld [vmem:[#allocation2 + $0x68] sm:$0xff]
        %v518 = vld [vmem:[#allocation2 + $0x70] sm:$0xff]
        %v519 = vld [vmem:[#allocation2 + $0x78] sm:$0xff]
        %v520 = vld [vmem:[#allocation6] sm:$0xff]
        %v521 = vld [vmem:[#allocation6 + $0x8] sm:$0xff]
        %v522 = vld [vmem:[#allocation6 + $0x10] sm:$0xff]
        %v523 = vld [vmem:[#allocation6 + $0x18] sm:$0xff]
        %v524 = vld [vmem:[#allocation6 + $0x20] sm:$0xff]
        %v525 = vld [vmem:[#allocation6 + $0x28] sm:$0xff]
        %v526 = vld [vmem:[#allocation6 + $0x30] sm:$0xff]
        %v527 = vld [vmem:[#allocation6 + $0x38] sm:$0xff]
        %v528 = vld [vmem:[#allocation6 + $0x40] sm:$0xff]
        %v529 = vld [vmem:[#allocation6 + $0x48] sm:$0xff]
        %v530 = vld [vmem:[#allocation6 + $0x50] sm:$0xff]
        %v531 = vld [vmem:[#allocation6 + $0x58] sm:$0xff]
        %v532 = vld [vmem:[#allocation6 + $0x60] sm:$0xff]
        %v533 = vld [vmem:[#allocation6 + $0x68] sm:$0xff]
        %v534 = vld [vmem:[#allocation6 + $0x70] sm:$0xff]
        %v535 = vld [vmem:[#allocation6 + $0x78] sm:$0xff]
        %v536 = vld [vmem:[#allocation6 + $0x80] sm:$0xff]
        %v537 = vld [vmem:[#allocation6 + $0x88] sm:$0xff]
        %v538 = vld [vmem:[#allocation6 + $0x90] sm:$0xff]
        %v539 = vld [vmem:[#allocation6 + $0x98] sm:$0xff]
        %v540 = vld [vmem:[#allocation6 + $0xa0] sm:$0xff]
        %v541 = vld [vmem:[#allocation6 + $0xa8] sm:$0xff]
        %v542 = vld [vmem:[#allocation6 + $0xb0] sm:$0xff]
        %v543 = vld [vmem:[#allocation6 + $0xb8] sm:$0xff]
        %v544 = vld [vmem:[#allocation6 + $0xc0] sm:$0xff]
        %v545 = vld [vmem:[#allocation6 + $0xc8] sm:$0xff]
        %v546 = vld [vmem:[#allocation6 + $0xd0] sm:$0xff]
        %v547 = vld [vmem:[#allocation6 + $0xd8] sm:$0xff]
        %v548 = vld [vmem:[#allocation6 + $0xe0] sm:$0xff]
        %v549 = vld [vmem:[#allocation6 + $0xe8] sm:$0xff]
        %v550 = vld [vmem:[#allocation6 + $0xf0] sm:$0xff]
        %v551 = vld [vmem:[#allocation6 + $0xf8] sm:$0xff]
        %v552 = vld [vmem:[#allocation6 + $0x100] sm:$0xff]
        %v553 = vld [vmem:[#allocation6 + $0x108] sm:$0xff]
        %v554 = vld [vmem:[#allocation6 + $0x110] sm:$0xff]
        %v555 = vld [vmem:[#allocation6 + $0x118] sm:$0xff]
        %v556 = vld [vmem:[#allocation6 + $0x120] sm:$0xff]
        %v557 = vld [vmem:[#allocation6 + $0x128] sm:$0xff]
        %v558 = vld [vmem:[#allocation6 + $0x130] sm:$0xff]
        %v559 = vld [vmem:[#allocation6 + $0x138] sm:$0xff]
        %v560 = vld [vmem:[#allocation6 + $0x140] sm:$0xff]
        %v561 = vld [vmem:[#allocation6 + $0x148] sm:$0xff]
        %v562 = vld [vmem:[#allocation6 + $0x150] sm:$0xff]
        %v563 = vld [vmem:[#allocation6 + $0x158] sm:$0xff]
        %v564 = vld [vmem:[#allocation6 + $0x160] sm:$0xff]
        %v565 = vld [vmem:[#allocation6 + $0x168] sm:$0xff]
        %v566 = vld [vmem:[#allocation6 + $0x170] sm:$0xff]
        %v567 = vld [vmem:[#allocation6 + $0x178] sm:$0xff]
        %v568 = vld [vmem:[#allocation6 + $0x180] sm:$0xff]
        %v569 = vld [vmem:[#allocation6 + $0x188] sm:$0xff]
        %v570 = vld [vmem:[#allocation6 + $0x190] sm:$0xff]
        %v571 = vld [vmem:[#allocation6 + $0x198] sm:$0xff]
        %v572 = vld [vmem:[#allocation6 + $0x1a0] sm:$0xff]
        %v573 = vld [vmem:[#allocation6 + $0x1a8] sm:$0xff]
        %v574 = vld [vmem:[#allocation6 + $0x1b0] sm:$0xff]
        %v575 = vld [vmem:[#allocation6 + $0x1b8] sm:$0xff]
        %v576 = vld [vmem:[#allocation6 + $0x1c0] sm:$0xff]
        %v577 = vld [vmem:[#allocation6 + $0x1c8] sm:$0xff]
        %v578 = vld [vmem:[#allocation6 + $0x1d0] sm:$0xff]
        %v579 = vld [vmem:[#allocation6 + $0x1d8] sm:$0xff]
        %v580 = vld [vmem:[#allocation6 + $0x1e0] sm:$0xff]
        %v581 = vld [vmem:[#allocation6 + $0x1e8] sm:$0xff]
        %v582 = vld [vmem:[#allocation6 + $0x1f0] sm:$0xff]
        %v583 = vld [vmem:[#allocation6 + $0x1f8] sm:$0xff]
        %v648 = vunpack.c.l.b16 %v520
        %v649 = vunpack.c.h.b16 %v520
        %v650 = vunpack.c.l.b16 %v521
        %v651 = vunpack.c.h.b16 %v521
        %v652 = vunpack.c.l.b16 %v522
        %v653 = vunpack.c.h.b16 %v522
        %v654 = vunpack.c.l.b16 %v523
        %v655 = vunpack.c.h.b16 %v523
        %v656 = vunpack.c.l.b16 %v524
        %v657 = vunpack.c.h.b16 %v524
        %v658 = vunpack.c.l.b16 %v525
        %v659 = vunpack.c.h.b16 %v525
        %v660 = vunpack.c.l.b16 %v526
        %v661 = vunpack.c.h.b16 %v526
        %v662 = vunpack.c.l.b16 %v527
        %v663 = vunpack.c.h.b16 %v527
        %v664 = vunpack.c.l.b16 %v528
        %v665 = vunpack.c.h.b16 %v528
        %v666 = vunpack.c.l.b16 %v529
        %v667 = vunpack.c.h.b16 %v529
        %v668 = vunpack.c.l.b16 %v530
        %v669 = vunpack.c.h.b16 %v530
        %v670 = vunpack.c.l.b16 %v531
        %v671 = vunpack.c.h.b16 %v531
        %v672 = vunpack.c.l.b16 %v532
        %v673 = vunpack.c.h.b16 %v532
        %v674 = vunpack.c.l.b16 %v533
        %v675 = vunpack.c.h.b16 %v533
        %v676 = vunpack.c.l.b16 %v534
        %v677 = vunpack.c.h.b16 %v534
        %v678 = vunpack.c.l.b16 %v535
        %v679 = vunpack.c.h.b16 %v535
        %v680 = vunpack.c.l.b16 %v536
        %v681 = vunpack.c.h.b16 %v536
        %v682 = vunpack.c.l.b16 %v537
        %v683 = vunpack.c.h.b16 %v537
        %v684 = vunpack.c.l.b16 %v538
        %v685 = vunpack.c.h.b16 %v538
        %v686 = vunpack.c.l.b16 %v539
        %v687 = vunpack.c.h.b16 %v539
        %v688 = vunpack.c.l.b16 %v540
        %v689 = vunpack.c.h.b16 %v540
        %v690 = vunpack.c.l.b16 %v541
        %v691 = vunpack.c.h.b16 %v541
        %v692 = vunpack.c.l.b16 %v542
        %v693 = vunpack.c.h.b16 %v542
        %v694 = vunpack.c.l.b16 %v543
        %v695 = vunpack.c.h.b16 %v543
        %v696 = vunpack.c.l.b16 %v544
        %v697 = vunpack.c.h.b16 %v544
        %v698 = vunpack.c.l.b16 %v545
        %v699 = vunpack.c.h.b16 %v545
        %v700 = vunpack.c.l.b16 %v546
        %v701 = vunpack.c.h.b16 %v546
        %v702 = vunpack.c.l.b16 %v547
        %v703 = vunpack.c.h.b16 %v547
        %v704 = vunpack.c.l.b16 %v548
        %v705 = vunpack.c.h.b16 %v548
        %v706 = vunpack.c.l.b16 %v549
        %v707 = vunpack.c.h.b16 %v549
        %v708 = vunpack.c.l.b16 %v550
        %v709 = vunpack.c.h.b16 %v550
        %v710 = vunpack.c.l.b16 %v551
        %v711 = vunpack.c.h.b16 %v551
        %v712 = vunpack.c.l.b16 %v552
        %v713 = vunpack.c.h.b16 %v552
        %v714 = vunpack.c.l.b16 %v553
        %v715 = vunpack.c.h.b16 %v553
        %v716 = vunpack.c.l.b16 %v554
        %v717 = vunpack.c.h.b16 %v554
        %v718 = vunpack.c.l.b16 %v555
        %v719 = vunpack.c.h.b16 %v555
        %v720 = vunpack.c.l.b16 %v556
        %v721 = vunpack.c.h.b16 %v556
        %v722 = vunpack.c.l.b16 %v557
        %v723 = vunpack.c.h.b16 %v557
        %v724 = vunpack.c.l.b16 %v558
        %v725 = vunpack.c.h.b16 %v558
        %v726 = vunpack.c.l.b16 %v559
        %v727 = vunpack.c.h.b16 %v559
        %v728 = vunpack.c.l.b16 %v560
        %v729 = vunpack.c.h.b16 %v560
        %v730 = vunpack.c.l.b16 %v561
        %v731 = vunpack.c.h.b16 %v561
        %v732 = vunpack.c.l.b16 %v562
        %v733 = vunpack.c.h.b16 %v562
        %v734 = vunpack.c.l.b16 %v563
        %v735 = vunpack.c.h.b16 %v563
        %v736 = vunpack.c.l.b16 %v564
        %v737 = vunpack.c.h.b16 %v564
        %v738 = vunpack.c.l.b16 %v565
        %v739 = vunpack.c.h.b16 %v565
        %v740 = vunpack.c.l.b16 %v566
        %v741 = vunpack.c.h.b16 %v566
        %v742 = vunpack.c.l.b16 %v567
        %v743 = vunpack.c.h.b16 %v567
        %v744 = vunpack.c.l.b16 %v568
        %v745 = vunpack.c.h.b16 %v568
        %v746 = vunpack.c.l.b16 %v569
        %v747 = vunpack.c.h.b16 %v569
        %v748 = vunpack.c.l.b16 %v570
        %v749 = vunpack.c.h.b16 %v570
        %v750 = vunpack.c.l.b16 %v571
        %v751 = vunpack.c.h.b16 %v571
        %v752 = vunpack.c.l.b16 %v572
        %v753 = vunpack.c.h.b16 %v572
        %v754 = vunpack.c.l.b16 %v573
        %v755 = vunpack.c.h.b16 %v573
        %v756 = vunpack.c.l.b16 %v574
        %v757 = vunpack.c.h.b16 %v574
        %v758 = vunpack.c.l.b16 %v575
        %v759 = vunpack.c.h.b16 %v575
        %v760 = vunpack.c.l.b16 %v576
        %v761 = vunpack.c.h.b16 %v576
        %v762 = vunpack.c.l.b16 %v577
        %v763 = vunpack.c.h.b16 %v577
        %v764 = vunpack.c.l.b16 %v578
        %v765 = vunpack.c.h.b16 %v578
        %v766 = vunpack.c.l.b16 %v579
        %v767 = vunpack.c.h.b16 %v579
        %v768 = vunpack.c.l.b16 %v580
        %v769 = vunpack.c.h.b16 %v580
        %v770 = vunpack.c.l.b16 %v581
        %v771 = vunpack.c.h.b16 %v581
        %v772 = vunpack.c.l.b16 %v582
        %v773 = vunpack.c.h.b16 %v582
        %v774 = vunpack.c.l.b16 %v583
        %v775 = vunpack.c.h.b16 %v583
        %v776 = vpack.c.b16 %v652, %v648
        %v777 = vpack.c.b16 %v653, %v649
        %v778 = vpack.c.b16 %v654, %v650
        %v779 = vpack.c.b16 %v655, %v651
        %v780 = vpack.c.b16 %v660, %v656
        %v781 = vpack.c.b16 %v661, %v657
        %v782 = vpack.c.b16 %v662, %v658
        %v783 = vpack.c.b16 %v663, %v659
        %v784 = vpack.c.b16 %v668, %v664
        %v785 = vpack.c.b16 %v669, %v665
        %v786 = vpack.c.b16 %v670, %v666
        %v787 = vpack.c.b16 %v671, %v667
        %v788 = vpack.c.b16 %v676, %v672
        %v789 = vpack.c.b16 %v677, %v673
        %v790 = vpack.c.b16 %v678, %v674
        %v791 = vpack.c.b16 %v679, %v675
        %v792 = vpack.c.b16 %v684, %v680
        %v793 = vpack.c.b16 %v685, %v681
        %v794 = vpack.c.b16 %v686, %v682
        %v795 = vpack.c.b16 %v687, %v683
        %v796 = vpack.c.b16 %v692, %v688
        %v797 = vpack.c.b16 %v693, %v689
        %v798 = vpack.c.b16 %v694, %v690
        %v799 = vpack.c.b16 %v695, %v691
        %v800 = vpack.c.b16 %v700, %v696
        %v801 = vpack.c.b16 %v701, %v697
        %v802 = vpack.c.b16 %v702, %v698
        %v803 = vpack.c.b16 %v703, %v699
        %v804 = vpack.c.b16 %v708, %v704
        %v805 = vpack.c.b16 %v709, %v705
        %v806 = vpack.c.b16 %v710, %v706
        %v807 = vpack.c.b16 %v711, %v707
        %v808 = vpack.c.b16 %v716, %v712
        %v809 = vpack.c.b16 %v717, %v713
        %v810 = vpack.c.b16 %v718, %v714
        %v811 = vpack.c.b16 %v719, %v715
        %v812 = vpack.c.b16 %v724, %v720
        %v813 = vpack.c.b16 %v725, %v721
        %v814 = vpack.c.b16 %v726, %v722
        %v815 = vpack.c.b16 %v727, %v723
        %v816 = vpack.c.b16 %v732, %v728
        %v817 = vpack.c.b16 %v733, %v729
        %v818 = vpack.c.b16 %v734, %v730
        %v819 = vpack.c.b16 %v735, %v731
        %v820 = vpack.c.b16 %v740, %v736
        %v821 = vpack.c.b16 %v741, %v737
        %v822 = vpack.c.b16 %v742, %v738
        %v823 = vpack.c.b16 %v743, %v739
        %v824 = vpack.c.b16 %v748, %v744
        %v825 = vpack.c.b16 %v749, %v745
        %v826 = vpack.c.b16 %v750, %v746
        %v827 = vpack.c.b16 %v751, %v747
        %v828 = vpack.c.b16 %v756, %v752
        %v829 = vpack.c.b16 %v757, %v753
        %v830 = vpack.c.b16 %v758, %v754
        %v831 = vpack.c.b16 %v759, %v755
        %v832 = vpack.c.b16 %v764, %v760
        %v833 = vpack.c.b16 %v765, %v761
        %v834 = vpack.c.b16 %v766, %v762
        %v835 = vpack.c.b16 %v767, %v763
        %v836 = vpack.c.b16 %v772, %v768
        %v837 = vpack.c.b16 %v773, %v769
        %v838 = vpack.c.b16 %v774, %v770
        %v839 = vpack.c.b16 %v775, %v771
        %904 = vmatprep.subr.bf16.mxu0 %v777
        %905 = vmatpush1.bf16.msra.mxu0 %v776
        %906 = vmatprep.subr.bf16.mxu0 %v781
        %907 = vmatpush1.bf16.msra.mxu0 %v780
        %908 = vmatprep.subr.bf16.mxu0 %v785
        %909 = vmatpush1.bf16.msra.mxu0 %v784
        %910 = vmatprep.subr.bf16.mxu0 %v789
        %911 = vmatpush1.bf16.msra.mxu0 %v788
        %912 = vmatprep.subr.bf16.mxu0 %v793
        %913 = vmatpush1.bf16.msra.mxu0 %v792
        %914 = vmatprep.subr.bf16.mxu0 %v797
        %915 = vmatpush1.bf16.msra.mxu0 %v796
        %916 = vmatprep.subr.bf16.mxu0 %v801
        %917 = vmatpush1.bf16.msra.mxu0 %v800
        %918 = vmatprep.subr.bf16.mxu0 %v805
        %919 = vmatpush1.bf16.msra.mxu0 %v804
        %920 = vmatprep.subr.bf16.mxu0 %v809
        %921 = vmatpush1.bf16.msra.mxu0 %v808
        %922 = vmatprep.subr.bf16.mxu0 %v813
        %923 = vmatpush1.bf16.msra.mxu0 %v812
        %924 = vmatprep.subr.bf16.mxu0 %v817
        %925 = vmatpush1.bf16.msra.mxu0 %v816
        %926 = vmatprep.subr.bf16.mxu0 %v821
        %927 = vmatpush1.bf16.msra.mxu0 %v820
        %928 = vmatprep.subr.bf16.mxu0 %v825
        %929 = vmatpush1.bf16.msra.mxu0 %v824
        %930 = vmatprep.subr.bf16.mxu0 %v829
        %931 = vmatpush1.bf16.msra.mxu0 %v828
        %932 = vmatprep.subr.bf16.mxu0 %v833
        %933 = vmatpush1.bf16.msra.mxu0 %v832
        %934 = vmatprep.subr.bf16.mxu0 %v837
        %935 = vmatpush1.bf16.msra.mxu0 %v836
        %936 = vmatprep.mubr.bf16.mxu0 %v505
        %937 = vmatmul.mubr.bf16.gmra.mrb[0].mxu0 %v504
        %v938 = vpop.f32.mrb[0].mxu0
        %v939 = vadd.f32 0.0, %v938
        %v940 = vpop.f32.mrb[0].mxu0
        %v941 = vadd.f32 0.0, %v940
        %v942 = vpop.f32.mrb[0].mxu0
        %v943 = vadd.f32 0.0, %v942
        %v944 = vpop.f32.mrb[0].mxu0
        %v945 = vadd.f32 0.0, %v944
        %946 = vmatprep.mubr.bf16.mxu0 %v507
        %947 = vmatmul.mubr.bf16.gmra.mrb[0].mxu0 %v506
        %v948 = vpop.f32.mrb[0].mxu0
        %v949 = vadd.f32 0.0, %v948
        %v950 = vpop.f32.mrb[0].mxu0
        %v951 = vadd.f32 0.0, %v950
        %v952 = vpop.f32.mrb[0].mxu0
        %v953 = vadd.f32 0.0, %v952
        %v954 = vpop.f32.mrb[0].mxu0
        %v955 = vadd.f32 0.0, %v954
        %956 = vmatprep.mubr.bf16.mxu0 %v509
        %957 = vmatmul.mubr.bf16.gmra.mrb[0].mxu0 %v508
        %v958 = vpop.f32.mrb[0].mxu0
        %v959 = vadd.f32 0.0, %v958
        %v960 = vpop.f32.mrb[0].mxu0
        %v961 = vadd.f32 0.0, %v960
        %v962 = vpop.f32.mrb[0].mxu0
        %v963 = vadd.f32 0.0, %v962
        %v964 = vpop.f32.mrb[0].mxu0
        %v965 = vadd.f32 0.0, %v964
        %966 = vmatprep.mubr.bf16.mxu0 %v511
        %967 = vmatmul.mubr.bf16.gmra.mrb[0].mxu0 %v510
        %v968 = vpop.f32.mrb[0].mxu0
        %v969 = vadd.f32 0.0, %v968
        %v970 = vpop.f32.mrb[0].mxu0
        %v971 = vadd.f32 0.0, %v970
        %v972 = vpop.f32.mrb[0].mxu0
        %v973 = vadd.f32 0.0, %v972
        %v974 = vpop.f32.mrb[0].mxu0
        %v975 = vadd.f32 0.0, %v974
        %976 = vmatprep.mubr.bf16.mxu0 %v513
        %977 = vmatmul.mubr.bf16.gmra.mrb[0].mxu0 %v512
        %v978 = vpop.f32.mrb[0].mxu0
        %v979 = vadd.f32 0.0, %v978
        %v980 = vpop.f32.mrb[0].mxu0
        %v981 = vadd.f32 0.0, %v980
        %v982 = vpop.f32.mrb[0].mxu0
        %v983 = vadd.f32 0.0, %v982
        %v984 = vpop.f32.mrb[0].mxu0
        %v985 = vadd.f32 0.0, %v984
        %986 = vmatprep.mubr.bf16.mxu0 %v515
        %987 = vmatmul.mubr.bf16.gmra.mrb[0].mxu0 %v514
        %v988 = vpop.f32.mrb[0].mxu0
        %v989 = vadd.f32 0.0, %v988
        %v990 = vpop.f32.mrb[0].mxu0
        %v991 = vadd.f32 0.0, %v990
        %v992 = vpop.f32.mrb[0].mxu0
        %v993 = vadd.f32 0.0, %v992
        %v994 = vpop.f32.mrb[0].mxu0
        %v995 = vadd.f32 0.0, %v994
        %996 = vmatprep.mubr.bf16.mxu0 %v517
        %997 = vmatmul.mubr.bf16.gmra.mrb[0].mxu0 %v516
        %v998 = vpop.f32.mrb[0].mxu0
        %v999 = vadd.f32 0.0, %v998
        %v1000 = vpop.f32.mrb[0].mxu0
        %v1001 = vadd.f32 0.0, %v1000
        %v1002 = vpop.f32.mrb[0].mxu0
        %v1003 = vadd.f32 0.0, %v1002
        %v1004 = vpop.f32.mrb[0].mxu0
        %v1005 = vadd.f32 0.0, %v1004
        %1006 = vmatprep.mubr.bf16.mxu0 %v519
        %1007 = vmatmul.mubr.bf16.gmra.mrb[0].mxu0 %v518
        %v1008 = vpop.f32.mrb[0].mxu0
        %v1009 = vadd.f32 0.0, %v1008
        %v1010 = vpop.f32.mrb[0].mxu0
        %v1011 = vadd.f32 0.0, %v1010
        %v1012 = vpop.f32.mrb[0].mxu0
        %v1013 = vadd.f32 0.0, %v1012
        %v1014 = vpop.f32.mrb[0].mxu0
        %v1015 = vadd.f32 0.0, %v1014
        %1016 = vdwg.mxu0
        %1017 = vmatprep.subr.bf16.mxu0 %v779
        %1018 = vmatpush1.bf16.msra.mxu0 %v778
        %1019 = vmatprep.subr.bf16.mxu0 %v783
        %1020 = vmatpush1.bf16.msra.mxu0 %v782
        %1021 = vmatprep.subr.bf16.mxu0 %v787
        %1022 = vmatpush1.bf16.msra.mxu0 %v786
        %1023 = vmatprep.subr.bf16.mxu0 %v791
        %1024 = vmatpush1.bf16.msra.mxu0 %v790
        %1025 = vmatprep.subr.bf16.mxu0 %v795
        %1026 = vmatpush1.bf16.msra.mxu0 %v794
        %1027 = vmatprep.subr.bf16.mxu0 %v799
        %1028 = vmatpush1.bf16.msra.mxu0 %v798
        %1029 = vmatprep.subr.bf16.mxu0 %v803
        %1030 = vmatpush1.bf16.msra.mxu0 %v802
        %1031 = vmatprep.subr.bf16.mxu0 %v807
        %1032 = vmatpush1.bf16.msra.mxu0 %v806
        %1033 = vmatprep.subr.bf16.mxu0 %v811
        %1034 = vmatpush1.bf16.msra.mxu0 %v810
        %1035 = vmatprep.subr.bf16.mxu0 %v815
        %1036 = vmatpush1.bf16.msra.mxu0 %v814
        %1037 = vmatprep.subr.bf16.mxu0 %v819
        %1038 = vmatpush1.bf16.msra.mxu0 %v818
        %1039 = vmatprep.subr.bf16.mxu0 %v823
        %1040 = vmatpush1.bf16.msra.mxu0 %v822
        %1041 = vmatprep.subr.bf16.mxu0 %v827
        %1042 = vmatpush1.bf16.msra.mxu0 %v826
        %1043 = vmatprep.subr.bf16.mxu0 %v831
        %1044 = vmatpush1.bf16.msra.mxu0 %v830
        %1045 = vmatprep.subr.bf16.mxu0 %v835
        %1046 = vmatpush1.bf16.msra.mxu0 %v834
        %1047 = vmatprep.subr.bf16.mxu0 %v839
        %1048 = vmatpush1.bf16.msra.mxu0 %v838
        %1049 = vmatprep.mubr.bf16.mxu0 %v505
        %1050 = vmatmul.mubr.bf16.gmra.mrb[0].mxu0 %v504
        %v1051 = vpop.f32.mrb[0].mxu0
        %v1052 = vadd.f32 0.0, %v1051
        %v1053 = vpop.f32.mrb[0].mxu0
        %v1054 = vadd.f32 0.0, %v1053
        %v1055 = vpop.f32.mrb[0].mxu0
        %v1056 = vadd.f32 0.0, %v1055
        %v1057 = vpop.f32.mrb[0].mxu0
        %v1058 = vadd.f32 0.0, %v1057
        %1059 = vmatprep.mubr.bf16.mxu0 %v507
        %1060 = vmatmul.mubr.bf16.gmra.mrb[0].mxu0 %v506
        %v1061 = vpop.f32.mrb[0].mxu0
        %v1062 = vadd.f32 0.0, %v1061
        %v1063 = vpop.f32.mrb[0].mxu0
        %v1064 = vadd.f32 0.0, %v1063
        %v1065 = vpop.f32.mrb[0].mxu0
        %v1066 = vadd.f32 0.0, %v1065
        %v1067 = vpop.f32.mrb[0].mxu0
        %v1068 = vadd.f32 0.0, %v1067
        %1069 = vmatprep.mubr.bf16.mxu0 %v509
        %1070 = vmatmul.mubr.bf16.gmra.mrb[0].mxu0 %v508
        %v1071 = vpop.f32.mrb[0].mxu0
        %v1072 = vadd.f32 0.0, %v1071
        %v1073 = vpop.f32.mrb[0].mxu0
        %v1074 = vadd.f32 0.0, %v1073
        %v1075 = vpop.f32.mrb[0].mxu0
        %v1076 = vadd.f32 0.0, %v1075
        %v1077 = vpop.f32.mrb[0].mxu0
        %v1078 = vadd.f32 0.0, %v1077
        %1079 = vmatprep.mubr.bf16.mxu0 %v511
        %1080 = vmatmul.mubr.bf16.gmra.mrb[0].mxu0 %v510
        %v1081 = vpop.f32.mrb[0].mxu0
        %v1082 = vadd.f32 0.0, %v1081
        %v1083 = vpop.f32.mrb[0].mxu0
        %v1084 = vadd.f32 0.0, %v1083
        %v1085 = vpop.f32.mrb[0].mxu0
        %v1086 = vadd.f32 0.0, %v1085
        %v1087 = vpop.f32.mrb[0].mxu0
        %v1088 = vadd.f32 0.0, %v1087
        %1089 = vmatprep.mubr.bf16.mxu0 %v513
        %1090 = vmatmul.mubr.bf16.gmra.mrb[0].mxu0 %v512
        %v1091 = vpop.f32.mrb[0].mxu0
        %v1092 = vadd.f32 0.0, %v1091
        %v1093 = vpop.f32.mrb[0].mxu0
        %v1094 = vadd.f32 0.0, %v1093
        %v1095 = vpop.f32.mrb[0].mxu0
        %v1096 = vadd.f32 0.0, %v1095
        %v1097 = vpop.f32.mrb[0].mxu0
        %v1098 = vadd.f32 0.0, %v1097
        %1099 = vmatprep.mubr.bf16.mxu0 %v515
        %1100 = vmatmul.mubr.bf16.gmra.mrb[0].mxu0 %v514
        %v1101 = vpop.f32.mrb[0].mxu0
        %v1102 = vadd.f32 0.0, %v1101
        %v1103 = vpop.f32.mrb[0].mxu0
        %v1104 = vadd.f32 0.0, %v1103
        %v1105 = vpop.f32.mrb[0].mxu0
        %v1106 = vadd.f32 0.0, %v1105
        %v1107 = vpop.f32.mrb[0].mxu0
        %v1108 = vadd.f32 0.0, %v1107
        %1109 = vmatprep.mubr.bf16.mxu0 %v517
        %1110 = vmatmul.mubr.bf16.gmra.mrb[0].mxu0 %v516
        %v1111 = vpop.f32.mrb[0].mxu0
        %v1112 = vadd.f32 0.0, %v1111
        %v1113 = vpop.f32.mrb[0].mxu0
        %v1114 = vadd.f32 0.0, %v1113
        %v1115 = vpop.f32.mrb[0].mxu0
        %v1116 = vadd.f32 0.0, %v1115
        %v1117 = vpop.f32.mrb[0].mxu0
        %v1118 = vadd.f32 0.0, %v1117
        %1119 = vmatprep.mubr.bf16.mxu0 %v519
        %1120 = vmatmul.mubr.bf16.gmra.mrb[0].mxu0 %v518
        %v1121 = vpop.f32.mrb[0].mxu0
        %v1122 = vadd.f32 0.0, %v1121
        %v1123 = vpop.f32.mrb[0].mxu0
        %v1124 = vadd.f32 0.0, %v1123
        %v1125 = vpop.f32.mrb[0].mxu0
        %v1126 = vadd.f32 0.0, %v1125
        %v1127 = vpop.f32.mrb[0].mxu0
        %v1128 = vadd.f32 0.0, %v1127
        %1129 = vdwg.mxu0
        %v1130 = vpack.c.bf16 %v943, %v939
        %v1131 = vpack.c.bf16 %v945, %v941
        %v1132 = vpack.c.bf16 %v1056, %v1052
        %v1133 = vpack.c.bf16 %v1058, %v1054
        %v1134 = vpack.c.bf16 %v953, %v949
        %v1135 = vpack.c.bf16 %v955, %v951
        %v1136 = vpack.c.bf16 %v1066, %v1062
        %v1137 = vpack.c.bf16 %v1068, %v1064
        %v1138 = vpack.c.bf16 %v963, %v959
        %v1139 = vpack.c.bf16 %v965, %v961
        %v1140 = vpack.c.bf16 %v1076, %v1072
        %v1141 = vpack.c.bf16 %v1078, %v1074
        %v1142 = vpack.c.bf16 %v973, %v969
        %v1143 = vpack.c.bf16 %v975, %v971
        %v1144 = vpack.c.bf16 %v1086, %v1082
        %v1145 = vpack.c.bf16 %v1088, %v1084
        %v1146 = vpack.c.bf16 %v983, %v979
        %v1147 = vpack.c.bf16 %v985, %v981
        %v1148 = vpack.c.bf16 %v1096, %v1092
        %v1149 = vpack.c.bf16 %v1098, %v1094
        %v1150 = vpack.c.bf16 %v993, %v989
        %v1151 = vpack.c.bf16 %v995, %v991
        %v1152 = vpack.c.bf16 %v1106, %v1102
        %v1153 = vpack.c.bf16 %v1108, %v1104
        %v1154 = vpack.c.bf16 %v1003, %v999
        %v1155 = vpack.c.bf16 %v1005, %v1001
        %v1156 = vpack.c.bf16 %v1116, %v1112
        %v1157 = vpack.c.bf16 %v1118, %v1114
        %v1158 = vpack.c.bf16 %v1013, %v1009
        %v1159 = vpack.c.bf16 %v1015, %v1011
        %v1160 = vpack.c.bf16 %v1126, %v1122
        %v1161 = vpack.c.bf16 %v1128, %v1124
        %v1194 = vunpack.c.l.b16 %v1130
        %v1195 = vunpack.c.l.b16 %v1131
        %v1196 = vunpack.c.l.b16 %v1132
        %v1197 = vunpack.c.l.b16 %v1133
        %v1198 = vunpack.c.h.b16 %v1130
        %v1199 = vunpack.c.h.b16 %v1131
        %v1200 = vunpack.c.h.b16 %v1132
        %v1201 = vunpack.c.h.b16 %v1133
        %v1202 = vunpack.c.l.b16 %v1134
        %v1203 = vunpack.c.l.b16 %v1135
        %v1204 = vunpack.c.l.b16 %v1136
        %v1205 = vunpack.c.l.b16 %v1137
        %v1206 = vunpack.c.h.b16 %v1134
        %v1207 = vunpack.c.h.b16 %v1135
        %v1208 = vunpack.c.h.b16 %v1136
        %v1209 = vunpack.c.h.b16 %v1137
        %v1210 = vunpack.c.l.b16 %v1138
        %v1211 = vunpack.c.l.b16 %v1139
        %v1212 = vunpack.c.l.b16 %v1140
        %v1213 = vunpack.c.l.b16 %v1141
        %v1214 = vunpack.c.h.b16 %v1138
        %v1215 = vunpack.c.h.b16 %v1139
        %v1216 = vunpack.c.h.b16 %v1140
        %v1217 = vunpack.c.h.b16 %v1141
        %v1218 = vunpack.c.l.b16 %v1142
        %v1219 = vunpack.c.l.b16 %v1143
        %v1220 = vunpack.c.l.b16 %v1144
        %v1221 = vunpack.c.l.b16 %v1145
        %v1222 = vunpack.c.h.b16 %v1142
        %v1223 = vunpack.c.h.b16 %v1143
        %v1224 = vunpack.c.h.b16 %v1144
        %v1225 = vunpack.c.h.b16 %v1145
        %v1226 = vunpack.c.l.b16 %v1146
        %v1227 = vunpack.c.l.b16 %v1147
        %v1228 = vunpack.c.l.b16 %v1148
        %v1229 = vunpack.c.l.b16 %v1149
        %v1230 = vunpack.c.h.b16 %v1146
        %v1231 = vunpack.c.h.b16 %v1147
        %v1232 = vunpack.c.h.b16 %v1148
        %v1233 = vunpack.c.h.b16 %v1149
        %v1234 = vunpack.c.l.b16 %v1150
        %v1235 = vunpack.c.l.b16 %v1151
        %v1236 = vunpack.c.l.b16 %v1152
        %v1237 = vunpack.c.l.b16 %v1153
        %v1238 = vunpack.c.h.b16 %v1150
        %v1239 = vunpack.c.h.b16 %v1151
        %v1240 = vunpack.c.h.b16 %v1152
        %v1241 = vunpack.c.h.b16 %v1153
        %v1242 = vunpack.c.l.b16 %v1154
        %v1243 = vunpack.c.l.b16 %v1155
        %v1244 = vunpack.c.l.b16 %v1156
        %v1245 = vunpack.c.l.b16 %v1157
        %v1246 = vunpack.c.h.b16 %v1154
        %v1247 = vunpack.c.h.b16 %v1155
        %v1248 = vunpack.c.h.b16 %v1156
        %v1249 = vunpack.c.h.b16 %v1157
        %v1250 = vunpack.c.l.b16 %v1158
        %v1251 = vunpack.c.l.b16 %v1159
        %v1252 = vunpack.c.l.b16 %v1160
        %v1253 = vunpack.c.l.b16 %v1161
        %v1254 = vunpack.c.h.b16 %v1158
        %v1255 = vunpack.c.h.b16 %v1159
        %v1256 = vunpack.c.h.b16 %v1160
        %v1257 = vunpack.c.h.b16 %v1161
        %v1258 = vpack.c.b16 %v1195, %v1194
        %v1259 = vpack.c.b16 %v1197, %v1196
        %v1260 = vpack.c.b16 %v1199, %v1198
        %v1261 = vpack.c.b16 %v1201, %v1200
        %v1262 = vpack.c.b16 %v1203, %v1202
        %v1263 = vpack.c.b16 %v1205, %v1204
        %v1264 = vpack.c.b16 %v1207, %v1206
        %v1265 = vpack.c.b16 %v1209, %v1208
        %v1266 = vpack.c.b16 %v1211, %v1210
        %v1267 = vpack.c.b16 %v1213, %v1212
        %v1268 = vpack.c.b16 %v1215, %v1214
        %v1269 = vpack.c.b16 %v1217, %v1216
        %v1270 = vpack.c.b16 %v1219, %v1218
        %v1271 = vpack.c.b16 %v1221, %v1220
        %v1272 = vpack.c.b16 %v1223, %v1222
        %v1273 = vpack.c.b16 %v1225, %v1224
        %v1274 = vpack.c.b16 %v1227, %v1226
        %v1275 = vpack.c.b16 %v1229, %v1228
        %v1276 = vpack.c.b16 %v1231, %v1230
        %v1277 = vpack.c.b16 %v1233, %v1232
        %v1278 = vpack.c.b16 %v1235, %v1234
        %v1279 = vpack.c.b16 %v1237, %v1236
        %v1280 = vpack.c.b16 %v1239, %v1238
        %v1281 = vpack.c.b16 %v1241, %v1240
        %v1282 = vpack.c.b16 %v1243, %v1242
        %v1283 = vpack.c.b16 %v1245, %v1244
        %v1284 = vpack.c.b16 %v1247, %v1246
        %v1285 = vpack.c.b16 %v1249, %v1248
        %v1286 = vpack.c.b16 %v1251, %v1250
        %v1287 = vpack.c.b16 %v1253, %v1252
        %v1288 = vpack.c.b16 %v1255, %v1254
        %v1289 = vpack.c.b16 %v1257, %v1256
        %1322 = vst [vmem:[%s226] sm:$0xff] %v1258
        %1323 = vst [vmem:[%s226 + $0x8] sm:$0xff] %v1259
        %1324 = vst [vmem:[%s226 + $0x10] sm:$0xff] %v1260
        %1325 = vst [vmem:[%s226 + $0x18] sm:$0xff] %v1261
        %1326 = vst [vmem:[%s226 + $0x20] sm:$0xff] %v1262
        %1327 = vst [vmem:[%s226 + $0x28] sm:$0xff] %v1263
        %1328 = vst [vmem:[%s226 + $0x30] sm:$0xff] %v1264
        %1329 = vst [vmem:[%s226 + $0x38] sm:$0xff] %v1265
        %1330 = vst [vmem:[%s226 + $0x40] sm:$0xff] %v1266
        %1331 = vst [vmem:[%s226 + $0x48] sm:$0xff] %v1267
        %1332 = vst [vmem:[%s226 + $0x50] sm:$0xff] %v1268
        %1333 = vst [vmem:[%s226 + $0x58] sm:$0xff] %v1269
        %1334 = vst [vmem:[%s226 + $0x60] sm:$0xff] %v1270
        %1335 = vst [vmem:[%s226 + $0x68] sm:$0xff] %v1271
        %1336 = vst [vmem:[%s226 + $0x70] sm:$0xff] %v1272
        %1337 = vst [vmem:[%s226 + $0x78] sm:$0xff] %v1273
        %1338 = vst [vmem:[%s226 + $0x80] sm:$0xff] %v1274
        %1339 = vst [vmem:[%s226 + $0x88] sm:$0xff] %v1275
        %1340 = vst [vmem:[%s226 + $0x90] sm:$0xff] %v1276
        %1341 = vst [vmem:[%s226 + $0x98] sm:$0xff] %v1277
        %1342 = vst [vmem:[%s226 + $0xa0] sm:$0xff] %v1278
        %1343 = vst [vmem:[%s226 + $0xa8] sm:$0xff] %v1279
        %1344 = vst [vmem:[%s226 + $0xb0] sm:$0xff] %v1280
        %1345 = vst [vmem:[%s226 + $0xb8] sm:$0xff] %v1281
        %1346 = vst [vmem:[%s226 + $0xc0] sm:$0xff] %v1282
        %1347 = vst [vmem:[%s226 + $0xc8] sm:$0xff] %v1283
        %1348 = vst [vmem:[%s226 + $0xd0] sm:$0xff] %v1284
        %1349 = vst [vmem:[%s226 + $0xd8] sm:$0xff] %v1285
        %1350 = vst [vmem:[%s226 + $0xe0] sm:$0xff] %v1286
        %1351 = vst [vmem:[%s226 + $0xe8] sm:$0xff] %v1287
        %1352 = vst [vmem:[%s226 + $0xf0] sm:$0xff] %v1288
        %1353 = vst [vmem:[%s226 + $0xf8] sm:$0xff] %v1289
        %s1354 = sand.u32 %s116, 1
        %s1355 = scalar_lea.sflag [#allocation5], %s1354
        %s1356 = sand.u32 %s116, 1
        %s1357 = smul.addr %s1356, 256
        %s1358 = scalar_lea.vmem [#allocation8], %s1357
        // Predicated region
        $region45: #{tpu_custom_call.1} parent=31 // pred_check
          %p1359 = pneg %p126
        $region46: #{tpu_custom_call.1} parent=31 // pred_check_branch
          %1361 = sbr.rel (%p1359) target = $region48
        $region47: #{tpu_custom_call.1} parent=31 // pred_region
          %s1362 = smul.u32 16, %s25
          %s1363 = smul.u32 4, %s26
          %s1365 = ssub.s32 4096, 4096
          %1366 = vsyncadd %s1355, %s1365
          %s1367 = smul.addr %s1362, 4
          %s1368 = sadd.s32 %s1363, %s1367
          %s1369 = smul.addr %s1368, 64
          %s1370 = scalar_lea.hbm %s3, %s1369
          %s1371 = sshll.u32 %s1358, 4
          %s1372 = int_to_ptr.vmem [resolvable:$true] %s1371
          %1377 = dma.vmem_to_hbm [thread:$0]  %s1372, 4096, %s1370, %s1355, 256, 256, 16
        $region48: #{tpu_custom_call.1} parent=31 // pred_fallthru
          _
      $region32: #{tpu_custom_call.1} parent=5 // pred_fallthru
        _
      %p1378 = scmp.le.s32.totalorder 2, %s16
      // Predicated region
      $region49: #{tpu_custom_call.1} parent=5 // pred_check
        %p1379 = pneg %p1378
      $region50: #{tpu_custom_call.1} parent=5 // pred_check_branch
        %1381 = sbr.rel (%p1379) target = $region52
      $region51: #{tpu_custom_call.1} parent=5 // pred_region
        %s1382 = ssub.s32 %s16, 2
        // Predicated region
        $region53: #{tpu_custom_call.1} parent=51 // pred_check
          %p1383 = pneg %p132
        $region54: #{tpu_custom_call.1} parent=51 // pred_check_branch
          %1385 = sbr.rel (%p1383) target = $region56
        $region55: #{tpu_custom_call.1} parent=51 // pred_region
          %s1386 = sand.u32 %s117, 1
          %s1387 = scalar_lea.sflag [#allocation5], %s1386
          %s1388 = sand.u32 %s117, 1
          %s1389 = smul.addr %s1388, 256
          %s1390 = scalar_lea.vmem [#allocation8], %s1389
          %1391 = dma.done %s1387, 4096
        $region56: #{tpu_custom_call.1} parent=51 // pred_fallthru
          _
      $region52: #{tpu_custom_call.1} parent=5 // pred_fallthru
        _
    $region6: #{tpu_custom_call.1} parent=1 // loop_footer
      %s20 = sadd.s32 1, %s16
    $region7: #{tpu_custom_call.1} parent=1 // loop_footer_branch
      %15 = sbr.rel target = $region3
    $region8: #{tpu_custom_call.1} parent=1 // loop_exit
      _
    %1392 = vsyncpa [#allocation4], 1
    %s1393 = scalar_lea.sflag [#allocation4], 1
    %1394 = vsyncpa %s1393, 1
    %1395 = vsyncpa [#allocation7], 1
    %1396 = vsyncpa [#allocation5], 1
    %s1397 = scalar_lea.sflag [#allocation5], 1
    %1398 = vsyncpa %s1397, 1

</llo_original>
